<compile_context>
chip_gen: v5e
topology: v5e:2x2
jax: 0.10.0
libtpu: 0.0.40
codegen_flags: <defaults>
</compile_context>

<pallas_src>
import functools

import numpy as np
import jax
import jax.numpy as jnp
from jax.experimental import pallas as pl
from jax.experimental.pallas import tpu as pltpu


def gaussian_kernel_np(sigma: float = 1.0, width: int = 0) -> np.ndarray:
    """Same math as the PyTorch GaussianKernel; returns (width, width) float32."""
    assert not ((width is None or width == 0) and (sigma is None or sigma == 0))
    if width is None or width == 0:
        width = int(2.0 * 3.0 * sigma + 1.0)
    if width % 2 == 0:
        width += 1
    if sigma is None or sigma == 0:
        sigma = (width - 1) / 6.0
    half = width // 2
    x, y = np.meshgrid(np.linspace(-half, half, width),
                       np.linspace(-half, half, width), indexing='xy')
    w = np.exp(-(x ** 2 + y ** 2) / (2.0 * sigma ** 2))
    w /= np.sum(w)
    return w.astype(np.float32)


def _blur_kernel(x_ref, o_ref, tmp_ref, *, g, H, W, pad, PW):
    # x_ref  : (H, W, TC)        input tile, channels on the lane axis
    # o_ref  : (H, W, TC)        output tile (lane-dense, unmasked stores)
    # tmp_ref: (H, Wq, TC) f32   scratch: vertical-pass result, payload at sublane-aligned
    #                            columns [PW, PW+W) with a zeroed `pad`-column halo each side
    # g      : length-K tuple of taps (compile-time constants, symmetric: g[pad+d]==g[pad-d])
    f32 = jnp.float32
    TC = x_ref.shape[-1]

    # Zero only the halo columns the horizontal pass reads, and only once (scratch persists).
    if pad > 0:
        @pl.when(pl.program_id(0) == 0)
        def _zero_halo():
            z = jnp.zeros((H, pad, TC), f32)
            tmp_ref[:, PW - pad:PW, :] = z
            tmp_ref[:, PW + W:PW + W + pad, :] = z

    # ---- vertical pass: clipped taps read directly from x_ref (no H-padded copy) ----
    mid_lo = min(pad, H)
    mid_hi = max(mid_lo, H - pad)
    if mid_hi > mid_lo:                       # interior rows: every tap in range
        acc = float(g[pad]) * x_ref[mid_lo:mid_hi, :, :].astype(f32)
        for d in range(1, pad + 1):           # symmetric pairs: 4 muls instead of 7
            gd = 0.5 * (float(g[pad - d]) + float(g[pad + d]))
            acc = acc + gd * (x_ref[mid_lo - d:mid_hi - d, :, :].astype(f32)
                              + x_ref[mid_lo + d:mid_hi + d, :, :].astype(f32))
        tmp_ref[mid_lo:mid_hi, PW:PW + W, :] = acc          # sublane-aligned store

    # top / bottom edge rows (<= 2*pad of them): per-row clipped tap set
    edge_rows = list(range(0, min(pad, H))) + list(range(max(pad, H - pad), H))
    for r in edge_rows:
        lo, hi = max(0, r - pad), min(H, r + pad + 1)
        row = float(g[pad + (lo - r)]) * x_ref[lo, :, :].astype(f32)
        for s in range(lo + 1, hi):
            row = row + float(g[pad + (s - r)]) * x_ref[s, :, :].astype(f32)
        tmp_ref[r, PW:PW + W, :] = row

    # ---- horizontal pass: symmetric shifted reads from the zero-haloed scratch ----
    # (misalignment kept on the read side; output store stays lane-dense & unmasked)
    out = float(g[pad]) * tmp_ref[:, PW:PW + W, :]
    for d in range(1, pad + 1):
        gd = 0.5 * (float(g[pad - d]) + float(g[pad + d]))
        out = out + gd * (tmp_ref[:, PW - d:PW - d + W, :]
                          + tmp_ref[:, PW + d:PW + d + W, :])
    o_ref[...] = out.astype(o_ref.dtype)


def gaussian_blur(x: jax.Array, sigma: float = 1.0, width: int = 0) -> jax.Array:
    """x: (B, C, H, W). Returns blurred tensor of same shape/dtype (depthwise conv, zero pad)."""
    w2d = gaussian_kernel_np(sigma, width)            # (K, K) deterministic "buffer"
    K = int(w2d.shape[0])
    pad = K // 2
    # Exact separable factorization of the isotropic Gaussian: outer(g1, g1) == w2d.
    g1 = tuple(float(v) for v in w2d.sum(axis=1))     # (K,) normalized 1-D taps

    B, C, H, W = x.shape
    BC = B * C
    LANES = 128
    BCp = ((BC + LANES - 1) // LANES) * LANES

    PW = max(8, ((pad + 7) // 8) * 8)                 # sublane-aligned left halo (>= pad)
    Wq = PW + ((W + pad + 7) // 8) * 8                # payload + right halo, multiple of 8

    # TODO(synk): the NCHW -> (H, W, B*C) relayout below costs an extra HBM round trip each
    # way; drop it when the call site can provide channels-last, or fuse it once an in-kernel
    # (TC,H,W)->(H,W,TC) transpose lowers cheaply.
    x_l = jnp.transpose(x.reshape(BC, H, W), (1, 2, 0))          # (H, W, BC)
    if BCp != BC:
        x_l = jnp.pad(x_l, ((0, 0), (0, 0), (0, BCp - BC)))

    # Generation-aware VMEM budget (128 MiB on v5e/v6e, 64 MiB on v7x).
    try:
        vmem_cap = int(pltpu.get_tpu_info().vmem_capacity_bytes)
    except Exception:
        vmem_cap = 64 * 1024 * 1024
    budget = vmem_cap // 3
    vmem_limit = int(min(vmem_cap * 3 // 4, vmem_cap - (4 << 20)))

    itemsize = jnp.dtype(x.dtype).itemsize
    # Per-128-lane block: double-buffered in/out (accounted even when the grid is 1),
    # the f32 W-halo scratch, and headroom for compiler-managed value temporaries.
    blk_unit = LANES * ((2 + 2) * H * W * itemsize
                        + 4 * H * Wq
                        + 4 * 4 * H * W)

    n = BCp // LANES
    fits = [d for d in range(1, n + 1) if n % d == 0 and d * blk_unit <= budget]
    if not fits:
        # TODO(synk): H row-strip tiling with a 2*pad-row halo (manual DMA) for very large
        # feature maps; not needed at these sizes.
        raise ValueError(
            f"gaussian_blur: one 128-lane block for H={H}, W={W} needs {blk_unit} B of VMEM "
            f"(budget {budget} B); H row-strip tiling is required for this shape.")
    multi = [d for d in fits if n // d >= 2]          # prefer >=2 grid steps (v7x megacore)
    TC = (max(multi) if multi else max(fits)) * LANES

    out = pl.pallas_call(
        functools.partial(_blur_kernel, g=g1, H=H, W=W, pad=pad, PW=PW),
        grid=(BCp // TC,),
        in_specs=[pl.BlockSpec((H, W, TC), lambda i: (0, 0, i))],
        out_specs=pl.BlockSpec((H, W, TC), lambda i: (0, 0, i)),
        out_shape=jax.ShapeDtypeStruct((H, W, BCp), x.dtype),
        scratch_shapes=[pltpu.VMEM((H, Wq, TC), jnp.float32)],
        compiler_params=pltpu.CompilerParams(
            dimension_semantics=("parallel",),        # 2-TC sharding on v7x when grid > 1
            vmem_limit_bytes=vmem_limit),
    )(x_l)

    out = out[:, :, :BC]                              # drop lane padding
    return jnp.transpose(out, (2, 0, 1)).reshape(B, C, H, W)


def _reference_blur_np(x_np: np.ndarray, sigma: float = 1.0, width: int = 0) -> np.ndarray:
    """Pure-numpy reference: depthwise conv2d with zero padding, like F.conv2d(..., groups=C)."""
    w2d = gaussian_kernel_np(sigma, width).astype(np.float64)
    K = w2d.shape[0]
    pad = K // 2
    B, C, H, W = x_np.shape
    xp = np.pad(x_np.astype(np.float64), ((0, 0), (0, 0), (pad, pad), (pad, pad)))
    out = np.zeros((B, C, H, W), dtype=np.float64)
    for ki in range(K):
        for kj in range(K):
            out += w2d[ki, kj] * xp[:, :, ki:ki + H, kj:kj + W]
    return out.astype(np.float32)


if __name__ == "__main__":
    key = jax.random.PRNGKey(0)
    x = jax.random.normal(key, (2, 4, 16, 16), dtype=jnp.float32)

    y = jax.block_until_ready(gaussian_blur(x, sigma=1.0, width=0))
    assert y.shape == x.shape and y.dtype == x.dtype

    y_ref = _reference_blur_np(np.asarray(x), sigma=1.0, width=0)
    np.testing.assert_allclose(np.asarray(y), y_ref, rtol=1e-5, atol=1e-5)

    print("KERNEL_OK")
</pallas_src>

<mosaic_0001>
module attributes {stable_mosaic.version = 11 : i64} {
  func.func @_blur_kernel(%arg0: i32, %arg1: memref<16x16x128xf32, #tpu.memory_space<vmem>>, %arg2: memref<16x16x128xf32, #tpu.memory_space<vmem>>, %arg3: memref<16x32x128xf32, #tpu.memory_space<vmem>>) attributes {dimension_semantics = [#tpu.dimension_semantics<parallel>], iteration_bounds = array<i64: 1>, scalar_prefetch = 0 : i64, scratch_operands = 1 : i64, tpu.core_type = #tpu.core_type<tc>, window_params = [{transform_indices = @transform_0, window_bounds = array<i64: 16, 16, 128>}, {transform_indices = @transform_1, window_bounds = array<i64: 16, 16, 128>}]} {
    %c0_i32 = arith.constant 0 : i32
    %0 = arith.cmpi eq, %arg0, %c0_i32 : i32
    %1 = arith.extui %0 : i1 to i32
    %c0_i32_0 = arith.constant 0 : i32
    %2 = arith.cmpi ne, %1, %c0_i32_0 : i32
    scf.if %2 {
      %cst_178 = arith.constant 0.000000e+00 : f32
      %209 = vector.broadcast %cst_178 : f32 to vector<16x3x128xf32>
      %c0_179 = arith.constant 0 : index
      %c5_180 = arith.constant 5 : index
      %c0_181 = arith.constant 0 : index
      %210 = vector.load %arg3[%c0_179, %c5_180, %c0_181] : memref<16x32x128xf32, #tpu.memory_space<vmem>>, vector<16x3x128xf32>
      tpu.vector_store %arg3[%c0_179, %c5_180, %c0_181], %209 {strides = array<i32>} : memref<16x32x128xf32, #tpu.memory_space<vmem>>, vector<16x3x128xf32>,
      %c0_182 = arith.constant 0 : index
      %c24 = arith.constant 24 : index
      %c0_183 = arith.constant 0 : index
      %211 = vector.load %arg3[%c0_182, %c24, %c0_183] : memref<16x32x128xf32, #tpu.memory_space<vmem>>, vector<16x3x128xf32>
      tpu.vector_store %arg3[%c0_182, %c24, %c0_183], %209 {strides = array<i32>} : memref<16x32x128xf32, #tpu.memory_space<vmem>>, vector<16x3x128xf32>,
    } else {
    }
    %c3 = arith.constant 3 : index
    %c0 = arith.constant 0 : index
    %c0_1 = arith.constant 0 : index
    %3 = vector.load %arg1[%c3, %c0, %c0_1] : memref<16x16x128xf32, #tpu.memory_space<vmem>>, vector<10x16x128xf32>
    %cst = arith.constant 0.399050295 : f32
    %4 = vector.broadcast %cst : f32 to vector<10x16x128xf32>
    %5 = arith.mulf %4, %3 : vector<10x16x128xf32>
    %c2 = arith.constant 2 : index
    %c0_2 = arith.constant 0 : index
    %c0_3 = arith.constant 0 : index
    %6 = vector.load %arg1[%c2, %c0_2, %c0_3] : memref<16x16x128xf32, #tpu.memory_space<vmem>>, vector<10x16x128xf32>
    %c4 = arith.constant 4 : index
    %c0_4 = arith.constant 0 : index
    %c0_5 = arith.constant 0 : index
    %7 = vector.load %arg1[%c4, %c0_4, %c0_5] : memref<16x16x128xf32, #tpu.memory_space<vmem>>, vector<10x16x128xf32>
    %8 = arith.addf %6, %7 : vector<10x16x128xf32>
    %cst_6 = arith.constant 0.242036223 : f32
    %9 = vector.broadcast %cst_6 : f32 to vector<10x16x128xf32>
    %10 = arith.mulf %9, %8 : vector<10x16x128xf32>
    %11 = arith.addf %5, %10 : vector<10x16x128xf32>
    %c1 = arith.constant 1 : index
    %c0_7 = arith.constant 0 : index
    %c0_8 = arith.constant 0 : index
    %12 = vector.load %arg1[%c1, %c0_7, %c0_8] : memref<16x16x128xf32, #tpu.memory_space<vmem>>, vector<10x16x128xf32>
    %c5 = arith.constant 5 : index
    %c0_9 = arith.constant 0 : index
    %c0_10 = arith.constant 0 : index
    %13 = vector.load %arg1[%c5, %c0_9, %c0_10] : memref<16x16x128xf32, #tpu.memory_space<vmem>>, vector<10x16x128xf32>
    %14 = arith.addf %12, %13 : vector<10x16x128xf32>
    %cst_11 = arith.constant 0.0540055856 : f32
    %15 = vector.broadcast %cst_11 : f32 to vector<10x16x128xf32>
    %16 = arith.mulf %15, %14 : vector<10x16x128xf32>
    %17 = arith.addf %11, %16 : vector<10x16x128xf32>
    %c0_12 = arith.constant 0 : index
    %c0_13 = arith.constant 0 : index
    %c0_14 = arith.constant 0 : index
    %18 = vector.load %arg1[%c0_12, %c0_13, %c0_14] : memref<16x16x128xf32, #tpu.memory_space<vmem>>, vector<10x16x128xf32>
    %c6 = arith.constant 6 : index
    %c0_15 = arith.constant 0 : index
    %c0_16 = arith.constant 0 : index
    %19 = vector.load %arg1[%c6, %c0_15, %c0_16] : memref<16x16x128xf32, #tpu.memory_space<vmem>>, vector<10x16x128xf32>
    %20 = arith.addf %18, %19 : vector<10x16x128xf32>
    %cst_17 = arith.constant 0.00443304796 : f32
    %21 = vector.broadcast %cst_17 : f32 to vector<10x16x128xf32>
    %22 = arith.mulf %21, %20 : vector<10x16x128xf32>
    %23 = arith.addf %17, %22 : vector<10x16x128xf32>
    %c3_18 = arith.constant 3 : index
    %c8 = arith.constant 8 : index
    %c0_19 = arith.constant 0 : index
    %24 = vector.load %arg3[%c3_18, %c8, %c0_19] : memref<16x32x128xf32, #tpu.memory_space<vmem>>, vector<10x16x128xf32>
    tpu.vector_store %arg3[%c3_18, %c8, %c0_19], %23 {strides = array<i32>} : memref<16x32x128xf32, #tpu.memory_space<vmem>>, vector<10x16x128xf32>,
    %c0_20 = arith.constant 0 : index
    %c0_21 = arith.constant 0 : index
    %c0_22 = arith.constant 0 : index
    %25 = vector.load %arg1[%c0_20, %c0_21, %c0_22] : memref<16x16x128xf32, #tpu.memory_space<vmem>>, vector<1x16x128xf32>
    %26 = vector.shape_cast %25 : vector<1x16x128xf32> to vector<16x128xf32>
    %cst_23 = arith.constant 0.399050295 : f32
    %27 = vector.broadcast %cst_23 : f32 to vector<16x128xf32>
    %28 = arith.mulf %27, %26 : vector<16x128xf32>
    %c1_24 = arith.constant 1 : index
    %c0_25 = arith.constant 0 : index
    %c0_26 = arith.constant 0 : index
    %29 = vector.load %arg1[%c1_24, %c0_25, %c0_26] : memref<16x16x128xf32, #tpu.memory_space<vmem>>, vector<1x16x128xf32>
    %30 = vector.shape_cast %29 : vector<1x16x128xf32> to vector<16x128xf32>
    %cst_27 = arith.constant 0.242036223 : f32
    %31 = vector.broadcast %cst_27 : f32 to vector<16x128xf32>
    %32 = arith.mulf %31, %30 : vector<16x128xf32>
    %33 = arith.addf %28, %32 : vector<16x128xf32>
    %c2_28 = arith.constant 2 : index
    %c0_29 = arith.constant 0 : index
    %c0_30 = arith.constant 0 : index
    %34 = vector.load %arg1[%c2_28, %c0_29, %c0_30] : memref<16x16x128xf32, #tpu.memory_space<vmem>>, vector<1x16x128xf32>
    %35 = vector.shape_cast %34 : vector<1x16x128xf32> to vector<16x128xf32>
    %cst_31 = arith.constant 0.0540055856 : f32
    %36 = vector.broadcast %cst_31 : f32 to vector<16x128xf32>
    %37 = arith.mulf %36, %35 : vector<16x128xf32>
    %38 = arith.addf %33, %37 : vector<16x128xf32>
    %c3_32 = arith.constant 3 : index
    %c0_33 = arith.constant 0 : index
    %c0_34 = arith.constant 0 : index
    %39 = vector.load %arg1[%c3_32, %c0_33, %c0_34] : memref<16x16x128xf32, #tpu.memory_space<vmem>>, vector<1x16x128xf32>
    %40 = vector.shape_cast %39 : vector<1x16x128xf32> to vector<16x128xf32>
    %cst_35 = arith.constant 0.00443304796 : f32
    %41 = vector.broadcast %cst_35 : f32 to vector<16x128xf32>
    %42 = arith.mulf %41, %40 : vector<16x128xf32>
    %43 = arith.addf %38, %42 : vector<16x128xf32>
    %c0_36 = arith.constant 0 : index
    %c8_37 = arith.constant 8 : index
    %c0_38 = arith.constant 0 : index
    %44 = vector.load %arg3[%c0_36, %c8_37, %c0_38] : memref<16x32x128xf32, #tpu.memory_space<vmem>>, vector<1x16x128xf32>
    %45 = vector.shape_cast %44 : vector<1x16x128xf32> to vector<16x128xf32>
    %46 = vector.shape_cast %43 : vector<16x128xf32> to vector<1x16x128xf32>
    tpu.vector_store %arg3[%c0_36, %c8_37, %c0_38], %46 {strides = array<i32>} : memref<16x32x128xf32, #tpu.memory_space<vmem>>, vector<1x16x128xf32>,
    %c0_39 = arith.constant 0 : index
    %c0_40 = arith.constant 0 : index
    %c0_41 = arith.constant 0 : index
    %47 = vector.load %arg1[%c0_39, %c0_40, %c0_41] : memref<16x16x128xf32, #tpu.memory_space<vmem>>, vector<1x16x128xf32>
    %48 = vector.shape_cast %47 : vector<1x16x128xf32> to vector<16x128xf32>
    %cst_42 = arith.constant 0.242036223 : f32
    %49 = vector.broadcast %cst_42 : f32 to vector<16x128xf32>
    %50 = arith.mulf %49, %48 : vector<16x128xf32>
    %c1_43 = arith.constant 1 : index
    %c0_44 = arith.constant 0 : index
    %c0_45 = arith.constant 0 : index
    %51 = vector.load %arg1[%c1_43, %c0_44, %c0_45] : memref<16x16x128xf32, #tpu.memory_space<vmem>>, vector<1x16x128xf32>
    %52 = vector.shape_cast %51 : vector<1x16x128xf32> to vector<16x128xf32>
    %cst_46 = arith.constant 0.399050295 : f32
    %53 = vector.broadcast %cst_46 : f32 to vector<16x128xf32>
    %54 = arith.mulf %53, %52 : vector<16x128xf32>
    %55 = arith.addf %50, %54 : vector<16x128xf32>
    %c2_47 = arith.constant 2 : index
    %c0_48 = arith.constant 0 : index
    %c0_49 = arith.constant 0 : index
    %56 = vector.load %arg1[%c2_47, %c0_48, %c0_49] : memref<16x16x128xf32, #tpu.memory_space<vmem>>, vector<1x16x128xf32>
    %57 = vector.shape_cast %56 : vector<1x16x128xf32> to vector<16x128xf32>
    %cst_50 = arith.constant 0.242036223 : f32
    %58 = vector.broadcast %cst_50 : f32 to vector<16x128xf32>
    %59 = arith.mulf %58, %57 : vector<16x128xf32>
    %60 = arith.addf %55, %59 : vector<16x128xf32>
    %c3_51 = arith.constant 3 : index
    %c0_52 = arith.constant 0 : index
    %c0_53 = arith.constant 0 : index
    %61 = vector.load %arg1[%c3_51, %c0_52, %c0_53] : memref<16x16x128xf32, #tpu.memory_space<vmem>>, vector<1x16x128xf32>
    %62 = vector.shape_cast %61 : vector<1x16x128xf32> to vector<16x128xf32>
    %cst_54 = arith.constant 0.0540055856 : f32
    %63 = vector.broadcast %cst_54 : f32 to vector<16x128xf32>
    %64 = arith.mulf %63, %62 : vector<16x128xf32>
    %65 = arith.addf %60, %64 : vector<16x128xf32>
    %c4_55 = arith.constant 4 : index
    %c0_56 = arith.constant 0 : index
    %c0_57 = arith.constant 0 : index
    %66 = vector.load %arg1[%c4_55, %c0_56, %c0_57] : memref<16x16x128xf32, #tpu.memory_space<vmem>>, vector<1x16x128xf32>
    %67 = vector.shape_cast %66 : vector<1x16x128xf32> to vector<16x128xf32>
    %cst_58 = arith.constant 0.00443304796 : f32
    %68 = vector.broadcast %cst_58 : f32 to vector<16x128xf32>
    %69 = arith.mulf %68, %67 : vector<16x128xf32>
    %70 = arith.addf %65, %69 : vector<16x128xf32>
    %c1_59 = arith.constant 1 : index
    %c8_60 = arith.constant 8 : index
    %c0_61 = arith.constant 0 : index
    %71 = vector.load %arg3[%c1_59, %c8_60, %c0_61] : memref<16x32x128xf32, #tpu.memory_space<vmem>>, vector<1x16x128xf32>
    %72 = vector.shape_cast %71 : vector<1x16x128xf32> to vector<16x128xf32>
    %73 = vector.shape_cast %70 : vector<16x128xf32> to vector<1x16x128xf32>
    tpu.vector_store %arg3[%c1_59, %c8_60, %c0_61], %73 {strides = array<i32>} : memref<16x32x128xf32, #tpu.memory_space<vmem>>, vector<1x16x128xf32>,
    %c0_62 = arith.constant 0 : index
    %c0_63 = arith.constant 0 : index
    %c0_64 = arith.constant 0 : index
    %74 = vector.load %arg1[%c0_62, %c0_63, %c0_64] : memref<16x16x128xf32, #tpu.memory_space<vmem>>, vector<1x16x128xf32>
    %75 = vector.shape_cast %74 : vector<1x16x128xf32> to vector<16x128xf32>
    %cst_65 = arith.constant 0.0540055856 : f32
    %76 = vector.broadcast %cst_65 : f32 to vector<16x128xf32>
    %77 = arith.mulf %76, %75 : vector<16x128xf32>
    %c1_66 = arith.constant 1 : index
    %c0_67 = arith.constant 0 : index
    %c0_68 = arith.constant 0 : index
    %78 = vector.load %arg1[%c1_66, %c0_67, %c0_68] : memref<16x16x128xf32, #tpu.memory_space<vmem>>, vector<1x16x128xf32>
    %79 = vector.shape_cast %78 : vector<1x16x128xf32> to vector<16x128xf32>
    %cst_69 = arith.constant 0.242036223 : f32
    %80 = vector.broadcast %cst_69 : f32 to vector<16x128xf32>
    %81 = arith.mulf %80, %79 : vector<16x128xf32>
    %82 = arith.addf %77, %81 : vector<16x128xf32>
    %c2_70 = arith.constant 2 : index
    %c0_71 = arith.constant 0 : index
    %c0_72 = arith.constant 0 : index
    %83 = vector.load %arg1[%c2_70, %c0_71, %c0_72] : memref<16x16x128xf32, #tpu.memory_space<vmem>>, vector<1x16x128xf32>
    %84 = vector.shape_cast %83 : vector<1x16x128xf32> to vector<16x128xf32>
    %cst_73 = arith.constant 0.399050295 : f32
    %85 = vector.broadcast %cst_73 : f32 to vector<16x128xf32>
    %86 = arith.mulf %85, %84 : vector<16x128xf32>
    %87 = arith.addf %82, %86 : vector<16x128xf32>
    %c3_74 = arith.constant 3 : index
    %c0_75 = arith.constant 0 : index
    %c0_76 = arith.constant 0 : index
    %88 = vector.load %arg1[%c3_74, %c0_75, %c0_76] : memref<16x16x128xf32, #tpu.memory_space<vmem>>, vector<1x16x128xf32>
    %89 = vector.shape_cast %88 : vector<1x16x128xf32> to vector<16x128xf32>
    %cst_77 = arith.constant 0.242036223 : f32
    %90 = vector.broadcast %cst_77 : f32 to vector<16x128xf32>
    %91 = arith.mulf %90, %89 : vector<16x128xf32>
    %92 = arith.addf %87, %91 : vector<16x128xf32>
    %c4_78 = arith.constant 4 : index
    %c0_79 = arith.constant 0 : index
    %c0_80 = arith.constant 0 : index
    %93 = vector.load %arg1[%c4_78, %c0_79, %c0_80] : memref<16x16x128xf32, #tpu.memory_space<vmem>>, vector<1x16x128xf32>
    %94 = vector.shape_cast %93 : vector<1x16x128xf32> to vector<16x128xf32>
    %cst_81 = arith.constant 0.0540055856 : f32
    %95 = vector.broadcast %cst_81 : f32 to vector<16x128xf32>
    %96 = arith.mulf %95, %94 : vector<16x128xf32>
    %97 = arith.addf %92, %96 : vector<16x128xf32>
    %c5_82 = arith.constant 5 : index
    %c0_83 = arith.constant 0 : index
    %c0_84 = arith.constant 0 : index
    %98 = vector.load %arg1[%c5_82, %c0_83, %c0_84] : memref<16x16x128xf32, #tpu.memory_space<vmem>>, vector<1x16x128xf32>
    %99 = vector.shape_cast %98 : vector<1x16x128xf32> to vector<16x128xf32>
    %cst_85 = arith.constant 0.00443304796 : f32
    %100 = vector.broadcast %cst_85 : f32 to vector<16x128xf32>
    %101 = arith.mulf %100, %99 : vector<16x128xf32>
    %102 = arith.addf %97, %101 : vector<16x128xf32>
    %c2_86 = arith.constant 2 : index
    %c8_87 = arith.constant 8 : index
    %c0_88 = arith.constant 0 : index
    %103 = vector.load %arg3[%c2_86, %c8_87, %c0_88] : memref<16x32x128xf32, #tpu.memory_space<vmem>>, vector<1x16x128xf32>
    %104 = vector.shape_cast %103 : vector<1x16x128xf32> to vector<16x128xf32>
    %105 = vector.shape_cast %102 : vector<16x128xf32> to vector<1x16x128xf32>
    tpu.vector_store %arg3[%c2_86, %c8_87, %c0_88], %105 {strides = array<i32>} : memref<16x32x128xf32, #tpu.memory_space<vmem>>, vector<1x16x128xf32>,
    %c10 = arith.constant 10 : index
    %c0_89 = arith.constant 0 : index
    %c0_90 = arith.constant 0 : index
    %106 = vector.load %arg1[%c10, %c0_89, %c0_90] : memref<16x16x128xf32, #tpu.memory_space<vmem>>, vector<1x16x128xf32>
    %107 = vector.shape_cast %106 : vector<1x16x128xf32> to vector<16x128xf32>
    %cst_91 = arith.constant 0.00443304796 : f32
    %108 = vector.broadcast %cst_91 : f32 to vector<16x128xf32>
    %109 = arith.mulf %108, %107 : vector<16x128xf32>
    %c11 = arith.constant 11 : index
    %c0_92 = arith.constant 0 : index
    %c0_93 = arith.constant 0 : index
    %110 = vector.load %arg1[%c11, %c0_92, %c0_93] : memref<16x16x128xf32, #tpu.memory_space<vmem>>, vector<1x16x128xf32>
    %111 = vector.shape_cast %110 : vector<1x16x128xf32> to vector<16x128xf32>
    %cst_94 = arith.constant 0.0540055856 : f32
    %112 = vector.broadcast %cst_94 : f32 to vector<16x128xf32>
    %113 = arith.mulf %112, %111 : vector<16x128xf32>
    %114 = arith.addf %109, %113 : vector<16x128xf32>
    %c12 = arith.constant 12 : index
    %c0_95 = arith.constant 0 : index
    %c0_96 = arith.constant 0 : index
    %115 = vector.load %arg1[%c12, %c0_95, %c0_96] : memref<16x16x128xf32, #tpu.memory_space<vmem>>, vector<1x16x128xf32>
    %116 = vector.shape_cast %115 : vector<1x16x128xf32> to vector<16x128xf32>
    %cst_97 = arith.constant 0.242036223 : f32
    %117 = vector.broadcast %cst_97 : f32 to vector<16x128xf32>
    %118 = arith.mulf %117, %116 : vector<16x128xf32>
    %119 = arith.addf %114, %118 : vector<16x128xf32>
    %c13 = arith.constant 13 : index
    %c0_98 = arith.constant 0 : index
    %c0_99 = arith.constant 0 : index
    %120 = vector.load %arg1[%c13, %c0_98, %c0_99] : memref<16x16x128xf32, #tpu.memory_space<vmem>>, vector<1x16x128xf32>
    %121 = vector.shape_cast %120 : vector<1x16x128xf32> to vector<16x128xf32>
    %cst_100 = arith.constant 0.399050295 : f32
    %122 = vector.broadcast %cst_100 : f32 to vector<16x128xf32>
    %123 = arith.mulf %122, %121 : vector<16x128xf32>
    %124 = arith.addf %119, %123 : vector<16x128xf32>
    %c14 = arith.constant 14 : index
    %c0_101 = arith.constant 0 : index
    %c0_102 = arith.constant 0 : index
    %125 = vector.load %arg1[%c14, %c0_101, %c0_102] : memref<16x16x128xf32, #tpu.memory_space<vmem>>, vector<1x16x128xf32>
    %126 = vector.shape_cast %125 : vector<1x16x128xf32> to vector<16x128xf32>
    %cst_103 = arith.constant 0.242036223 : f32
    %127 = vector.broadcast %cst_103 : f32 to vector<16x128xf32>
    %128 = arith.mulf %127, %126 : vector<16x128xf32>
    %129 = arith.addf %124, %128 : vector<16x128xf32>
    %c15 = arith.constant 15 : index
    %c0_104 = arith.constant 0 : index
    %c0_105 = arith.constant 0 : index
    %130 = vector.load %arg1[%c15, %c0_104, %c0_105] : memref<16x16x128xf32, #tpu.memory_space<vmem>>, vector<1x16x128xf32>
    %131 = vector.shape_cast %130 : vector<1x16x128xf32> to vector<16x128xf32>
    %cst_106 = arith.constant 0.0540055856 : f32
    %132 = vector.broadcast %cst_106 : f32 to vector<16x128xf32>
    %133 = arith.mulf %132, %131 : vector<16x128xf32>
    %134 = arith.addf %129, %133 : vector<16x128xf32>
    %c13_107 = arith.constant 13 : index
    %c8_108 = arith.constant 8 : index
    %c0_109 = arith.constant 0 : index
    %135 = vector.load %arg3[%c13_107, %c8_108, %c0_109] : memref<16x32x128xf32, #tpu.memory_space<vmem>>, vector<1x16x128xf32>
    %136 = vector.shape_cast %135 : vector<1x16x128xf32> to vector<16x128xf32>
    %137 = vector.shape_cast %134 : vector<16x128xf32> to vector<1x16x128xf32>
    tpu.vector_store %arg3[%c13_107, %c8_108, %c0_109], %137 {strides = array<i32>} : memref<16x32x128xf32, #tpu.memory_space<vmem>>, vector<1x16x128xf32>,
    %c11_110 = arith.constant 11 : index
    %c0_111 = arith.constant 0 : index
    %c0_112 = arith.constant 0 : index
    %138 = vector.load %arg1[%c11_110, %c0_111, %c0_112] : memref<16x16x128xf32, #tpu.memory_space<vmem>>, vector<1x16x128xf32>
    %139 = vector.shape_cast %138 : vector<1x16x128xf32> to vector<16x128xf32>
    %cst_113 = arith.constant 0.00443304796 : f32
    %140 = vector.broadcast %cst_113 : f32 to vector<16x128xf32>
    %141 = arith.mulf %140, %139 : vector<16x128xf32>
    %c12_114 = arith.constant 12 : index
    %c0_115 = arith.constant 0 : index
    %c0_116 = arith.constant 0 : index
    %142 = vector.load %arg1[%c12_114, %c0_115, %c0_116] : memref<16x16x128xf32, #tpu.memory_space<vmem>>, vector<1x16x128xf32>
    %143 = vector.shape_cast %142 : vector<1x16x128xf32> to vector<16x128xf32>
    %cst_117 = arith.constant 0.0540055856 : f32
    %144 = vector.broadcast %cst_117 : f32 to vector<16x128xf32>
    %145 = arith.mulf %144, %143 : vector<16x128xf32>
    %146 = arith.addf %141, %145 : vector<16x128xf32>
    %c13_118 = arith.constant 13 : index
    %c0_119 = arith.constant 0 : index
    %c0_120 = arith.constant 0 : index
    %147 = vector.load %arg1[%c13_118, %c0_119, %c0_120] : memref<16x16x128xf32, #tpu.memory_space<vmem>>, vector<1x16x128xf32>
    %148 = vector.shape_cast %147 : vector<1x16x128xf32> to vector<16x128xf32>
    %cst_121 = arith.constant 0.242036223 : f32
    %149 = vector.broadcast %cst_121 : f32 to vector<16x128xf32>
    %150 = arith.mulf %149, %148 : vector<16x128xf32>
    %151 = arith.addf %146, %150 : vector<16x128xf32>
    %c14_122 = arith.constant 14 : index
    %c0_123 = arith.constant 0 : index
    %c0_124 = arith.constant 0 : index
    %152 = vector.load %arg1[%c14_122, %c0_123, %c0_124] : memref<16x16x128xf32, #tpu.memory_space<vmem>>, vector<1x16x128xf32>
    %153 = vector.shape_cast %152 : vector<1x16x128xf32> to vector<16x128xf32>
    %cst_125 = arith.constant 0.399050295 : f32
    %154 = vector.broadcast %cst_125 : f32 to vector<16x128xf32>
    %155 = arith.mulf %154, %153 : vector<16x128xf32>
    %156 = arith.addf %151, %155 : vector<16x128xf32>
    %c15_126 = arith.constant 15 : index
    %c0_127 = arith.constant 0 : index
    %c0_128 = arith.constant 0 : index
    %157 = vector.load %arg1[%c15_126, %c0_127, %c0_128] : memref<16x16x128xf32, #tpu.memory_space<vmem>>, vector<1x16x128xf32>
    %158 = vector.shape_cast %157 : vector<1x16x128xf32> to vector<16x128xf32>
    %cst_129 = arith.constant 0.242036223 : f32
    %159 = vector.broadcast %cst_129 : f32 to vector<16x128xf32>
    %160 = arith.mulf %159, %158 : vector<16x128xf32>
    %161 = arith.addf %156, %160 : vector<16x128xf32>
    %c14_130 = arith.constant 14 : index
    %c8_131 = arith.constant 8 : index
    %c0_132 = arith.constant 0 : index
    %162 = vector.load %arg3[%c14_130, %c8_131, %c0_132] : memref<16x32x128xf32, #tpu.memory_space<vmem>>, vector<1x16x128xf32>
    %163 = vector.shape_cast %162 : vector<1x16x128xf32> to vector<16x128xf32>
    %164 = vector.shape_cast %161 : vector<16x128xf32> to vector<1x16x128xf32>
    tpu.vector_store %arg3[%c14_130, %c8_131, %c0_132], %164 {strides = array<i32>} : memref<16x32x128xf32, #tpu.memory_space<vmem>>, vector<1x16x128xf32>,
    %c12_133 = arith.constant 12 : index
    %c0_134 = arith.constant 0 : index
    %c0_135 = arith.constant 0 : index
    %165 = vector.load %arg1[%c12_133, %c0_134, %c0_135] : memref<16x16x128xf32, #tpu.memory_space<vmem>>, vector<1x16x128xf32>
    %166 = vector.shape_cast %165 : vector<1x16x128xf32> to vector<16x128xf32>
    %cst_136 = arith.constant 0.00443304796 : f32
    %167 = vector.broadcast %cst_136 : f32 to vector<16x128xf32>
    %168 = arith.mulf %167, %166 : vector<16x128xf32>
    %c13_137 = arith.constant 13 : index
    %c0_138 = arith.constant 0 : index
    %c0_139 = arith.constant 0 : index
    %169 = vector.load %arg1[%c13_137, %c0_138, %c0_139] : memref<16x16x128xf32, #tpu.memory_space<vmem>>, vector<1x16x128xf32>
    %170 = vector.shape_cast %169 : vector<1x16x128xf32> to vector<16x128xf32>
    %cst_140 = arith.constant 0.0540055856 : f32
    %171 = vector.broadcast %cst_140 : f32 to vector<16x128xf32>
    %172 = arith.mulf %171, %170 : vector<16x128xf32>
    %173 = arith.addf %168, %172 : vector<16x128xf32>
    %c14_141 = arith.constant 14 : index
    %c0_142 = arith.constant 0 : index
    %c0_143 = arith.constant 0 : index
    %174 = vector.load %arg1[%c14_141, %c0_142, %c0_143] : memref<16x16x128xf32, #tpu.memory_space<vmem>>, vector<1x16x128xf32>
    %175 = vector.shape_cast %174 : vector<1x16x128xf32> to vector<16x128xf32>
    %cst_144 = arith.constant 0.242036223 : f32
    %176 = vector.broadcast %cst_144 : f32 to vector<16x128xf32>
    %177 = arith.mulf %176, %175 : vector<16x128xf32>
    %178 = arith.addf %173, %177 : vector<16x128xf32>
    %c15_145 = arith.constant 15 : index
    %c0_146 = arith.constant 0 : index
    %c0_147 = arith.constant 0 : index
    %179 = vector.load %arg1[%c15_145, %c0_146, %c0_147] : memref<16x16x128xf32, #tpu.memory_space<vmem>>, vector<1x16x128xf32>
    %180 = vector.shape_cast %179 : vector<1x16x128xf32> to vector<16x128xf32>
    %cst_148 = arith.constant 0.399050295 : f32
    %181 = vector.broadcast %cst_148 : f32 to vector<16x128xf32>
    %182 = arith.mulf %181, %180 : vector<16x128xf32>
    %183 = arith.addf %178, %182 : vector<16x128xf32>
    %c15_149 = arith.constant 15 : index
    %c8_150 = arith.constant 8 : index
    %c0_151 = arith.constant 0 : index
    %184 = vector.load %arg3[%c15_149, %c8_150, %c0_151] : memref<16x32x128xf32, #tpu.memory_space<vmem>>, vector<1x16x128xf32>
    %185 = vector.shape_cast %184 : vector<1x16x128xf32> to vector<16x128xf32>
    %186 = vector.shape_cast %183 : vector<16x128xf32> to vector<1x16x128xf32>
    tpu.vector_store %arg3[%c15_149, %c8_150, %c0_151], %186 {strides = array<i32>} : memref<16x32x128xf32, #tpu.memory_space<vmem>>, vector<1x16x128xf32>,
    %c0_152 = arith.constant 0 : index
    %c8_153 = arith.constant 8 : index
    %c0_154 = arith.constant 0 : index
    %187 = vector.load %arg3[%c0_152, %c8_153, %c0_154] : memref<16x32x128xf32, #tpu.memory_space<vmem>>, vector<16x16x128xf32>
    %cst_155 = arith.constant 0.399050295 : f32
    %188 = vector.broadcast %cst_155 : f32 to vector<16x16x128xf32>
    %189 = arith.mulf %188, %187 : vector<16x16x128xf32>
    %c0_156 = arith.constant 0 : index
    %c7 = arith.constant 7 : index
    %c0_157 = arith.constant 0 : index
    %190 = vector.load %arg3[%c0_156, %c7, %c0_157] : memref<16x32x128xf32, #tpu.memory_space<vmem>>, vector<16x16x128xf32>
    %c0_158 = arith.constant 0 : index
    %c9 = arith.constant 9 : index
    %c0_159 = arith.constant 0 : index
    %191 = vector.load %arg3[%c0_158, %c9, %c0_159] : memref<16x32x128xf32, #tpu.memory_space<vmem>>, vector<16x16x128xf32>
    %192 = arith.addf %190, %191 : vector<16x16x128xf32>
    %cst_160 = arith.constant 0.242036223 : f32
    %193 = vector.broadcast %cst_160 : f32 to vector<16x16x128xf32>
    %194 = arith.mulf %193, %192 : vector<16x16x128xf32>
    %195 = arith.addf %189, %194 : vector<16x16x128xf32>
    %c0_161 = arith.constant 0 : index
    %c6_162 = arith.constant 6 : index
    %c0_163 = arith.constant 0 : index
    %196 = vector.load %arg3[%c0_161, %c6_162, %c0_163] : memref<16x32x128xf32, #tpu.memory_space<vmem>>, vector<16x16x128xf32>
    %c0_164 = arith.constant 0 : index
    %c10_165 = arith.constant 10 : index
    %c0_166 = arith.constant 0 : index
    %197 = vector.load %arg3[%c0_164, %c10_165, %c0_166] : memref<16x32x128xf32, #tpu.memory_space<vmem>>, vector<16x16x128xf32>
    %198 = arith.addf %196, %197 : vector<16x16x128xf32>
    %cst_167 = arith.constant 0.0540055856 : f32
    %199 = vector.broadcast %cst_167 : f32 to vector<16x16x128xf32>
    %200 = arith.mulf %199, %198 : vector<16x16x128xf32>
    %201 = arith.addf %195, %200 : vector<16x16x128xf32>
    %c0_168 = arith.constant 0 : index
    %c5_169 = arith.constant 5 : index
    %c0_170 = arith.constant 0 : index
    %202 = vector.load %arg3[%c0_168, %c5_169, %c0_170] : memref<16x32x128xf32, #tpu.memory_space<vmem>>, vector<16x16x128xf32>
    %c0_171 = arith.constant 0 : index
    %c11_172 = arith.constant 11 : index
    %c0_173 = arith.constant 0 : index
    %203 = vector.load %arg3[%c0_171, %c11_172, %c0_173] : memref<16x32x128xf32, #tpu.memory_space<vmem>>, vector<16x16x128xf32>
    %204 = arith.addf %202, %203 : vector<16x16x128xf32>
    %cst_174 = arith.constant 0.00443304796 : f32
    %205 = vector.broadcast %cst_174 : f32 to vector<16x16x128xf32>
    %206 = arith.mulf %205, %204 : vector<16x16x128xf32>
    %207 = arith.addf %201, %206 : vector<16x16x128xf32>
    %c0_175 = arith.constant 0 : index
    %c0_176 = arith.constant 0 : index
    %c0_177 = arith.constant 0 : index
    %208 = vector.load %arg2[%c0_175, %c0_176, %c0_177] : memref<16x16x128xf32, #tpu.memory_space<vmem>>, vector<16x16x128xf32>
    tpu.vector_store %arg2[%c0_175, %c0_176, %c0_177], %207 {strides = array<i32>} : memref<16x16x128xf32, #tpu.memory_space<vmem>>, vector<16x16x128xf32>,
    return
  }
  func.func @transform_0(%arg0: i32) -> (i32, i32, i32) {
    %c0_i32 = arith.constant 0 : i32
    %c0_i32_0 = arith.constant 0 : i32
    %c0_i32_1 = arith.constant 0 : i32
    return %c0_i32, %c0_i32_0, %arg0 : i32, i32, i32
  }
  func.func @transform_1(%arg0: i32) -> (i32, i32, i32) {
    %c0_i32 = arith.constant 0 : i32
    %c0_i32_0 = arith.constant 0 : i32
    %c0_i32_1 = arith.constant 0 : i32
    return %c0_i32, %c0_i32_0, %arg0 : i32, i32, i32
  }
}

</mosaic_0001>

<llo_original>
// kernel: tpu_custom_call.1
$region0: #{tpu_custom_call.1}
  #allocation0 [shape = 'u32[]', space=smem, size = 0x4, offset = 0x4, fixed_abs, tag = 'smem constant byte address 0x4 - core index']
  #allocation1 [shape = 'u32[72,128]{1,0:T(1,128)}', space=vmem, size = 0x9000, scoped, tag = 'internal scratch']
  #allocation2 [shape = 'f32[16,32,128]{2,1,0:T(8,128)}', space=vmem, size = 0x40000, scoped, tag = 'scratch operand']
  %s0 = inlined_call_operand.hbm [shape: f32[16,16,128], index: 0, kind: input, shape index: {}]
  %s1 = inlined_call_operand.hbm [shape: f32[16,16,128], index: 1, kind: output, shape index: {}]
  %s2 = sld [smem:[#allocation0]]
  $region22: #{tpu_custom_call.1} parent=0
    _
  %s4 = ssub.s32 1, %s2
  %s5 = scalar_select 0, %s4, %s2
  $region1: #{tpu_custom_call.1} parent=0
    #allocation3 [shape = 'u8[131072]{0}', space=vmem, size = 0x20000, scoped, tag = 'input window, operand 0, single buffered']
    #allocation4 [shape = 's32[1]{0}', space=sflag, size = 0x4, scoped, tag = 'scoped memory for tpu_custom_call.1']
    #allocation5 [shape = 's32[1]{0}', space=sflag, size = 0x4, scoped, tag = 'scoped memory for tpu_custom_call.1']
    #allocation6 [shape = 'u8[131072]{0}', space=vmem, size = 0x20000, scoped, tag = 'output window, operand 0, single buffered']
    %6 = vsyncpa [#allocation4], 0
    %7 = vsyncpa [#allocation5], 0
    // Predicated region
    $region2: #{tpu_custom_call.1} parent=1 // pred_check
      _
    $region3: #{tpu_custom_call.1} parent=1 // pred_check_branch
      %9 = sbr.rel (0) target = $region5
    $region4: #{tpu_custom_call.1} parent=1 // pred_region
      %11 = vsyncadd [#allocation4], 0
      %s12 = sshll.u32 %s0, 4
      %s13 = int_to_ptr.hbm [resolvable:$true] %s12
      %s14 = sshll.u32 [#allocation3], 4
      %s15 = int_to_ptr.vmem [resolvable:$true] %s14
      %20 = dma.hbm_to_vmem [thread:$0]  %s13, 4096, %s15, [#allocation4], 128, 128, 8
    $region5: #{tpu_custom_call.1} parent=1 // pred_fallthru
      _
    // Predicated region
    $region6: #{tpu_custom_call.1} parent=1 // pred_check
      _
    $region7: #{tpu_custom_call.1} parent=1 // pred_check_branch
      %22 = sbr.rel (0) target = $region9
    $region8: #{tpu_custom_call.1} parent=1 // pred_region
      %24 = dma.done [#allocation4], 4096
    $region9: #{tpu_custom_call.1} parent=1 // pred_fallthru
      _
    %p25 = scmp.eq.s32.totalorder 0, 0
    // Predicated region
    $region10: #{tpu_custom_call.1} parent=1 // pred_check
      %p26 = pneg %p25
    $region11: #{tpu_custom_call.1} parent=1 // pred_check_branch
      %28 = sbr.rel (%p26) target = $region13
    $region12: #{tpu_custom_call.1} parent=1 // pred_region
      %29 = vst [vmem:[#allocation2 + $0x5] sm:$0x7] 0.0
      %30 = vst [vmem:[#allocation2 + $0x25] sm:$0x7] 0.0
      %31 = vst [vmem:[#allocation2 + $0x45] sm:$0x7] 0.0
      %32 = vst [vmem:[#allocation2 + $0x65] sm:$0x7] 0.0
      %33 = vst [vmem:[#allocation2 + $0x85] sm:$0x7] 0.0
      %34 = vst [vmem:[#allocation2 + $0xa5] sm:$0x7] 0.0
      %35 = vst [vmem:[#allocation2 + $0xc5] sm:$0x7] 0.0
      %36 = vst [vmem:[#allocation2 + $0xe5] sm:$0x7] 0.0
      %37 = vst [vmem:[#allocation2 + $0x105] sm:$0x7] 0.0
      %38 = vst [vmem:[#allocation2 + $0x125] sm:$0x7] 0.0
      %39 = vst [vmem:[#allocation2 + $0x145] sm:$0x7] 0.0
      %40 = vst [vmem:[#allocation2 + $0x165] sm:$0x7] 0.0
      %41 = vst [vmem:[#allocation2 + $0x185] sm:$0x7] 0.0
      %42 = vst [vmem:[#allocation2 + $0x1a5] sm:$0x7] 0.0
      %43 = vst [vmem:[#allocation2 + $0x1c5] sm:$0x7] 0.0
      %44 = vst [vmem:[#allocation2 + $0x1e5] sm:$0x7] 0.0
      %45 = vst [vmem:[#allocation2 + $0x18] sm:$0x7] 0.0
      %46 = vst [vmem:[#allocation2 + $0x38] sm:$0x7] 0.0
      %47 = vst [vmem:[#allocation2 + $0x58] sm:$0x7] 0.0
      %48 = vst [vmem:[#allocation2 + $0x78] sm:$0x7] 0.0
      %49 = vst [vmem:[#allocation2 + $0x98] sm:$0x7] 0.0
      %50 = vst [vmem:[#allocation2 + $0xb8] sm:$0x7] 0.0
      %51 = vst [vmem:[#allocation2 + $0xd8] sm:$0x7] 0.0
      %52 = vst [vmem:[#allocation2 + $0xf8] sm:$0x7] 0.0
      %53 = vst [vmem:[#allocation2 + $0x118] sm:$0x7] 0.0
      %54 = vst [vmem:[#allocation2 + $0x138] sm:$0x7] 0.0
      %55 = vst [vmem:[#allocation2 + $0x158] sm:$0x7] 0.0
      %56 = vst [vmem:[#allocation2 + $0x178] sm:$0x7] 0.0
      %57 = vst [vmem:[#allocation2 + $0x198] sm:$0x7] 0.0
      %58 = vst [vmem:[#allocation2 + $0x1b8] sm:$0x7] 0.0
      %59 = vst [vmem:[#allocation2 + $0x1d8] sm:$0x7] 0.0
      %60 = vst [vmem:[#allocation2 + $0x1f8] sm:$0x7] 0.0
    $region13: #{tpu_custom_call.1} parent=1 // pred_fallthru
      _
    %s61 = scalar_lea.vmem [#allocation3], 48
    %v62 = vld [vmem:[%s61] sm:$0xff]
    %v63 = vld [vmem:[%s61 + $0x8] sm:$0xff]
    %v64 = vld [vmem:[%s61 + $0x10] sm:$0xff]
    %v65 = vld [vmem:[%s61 + $0x18] sm:$0xff]
    %v66 = vld [vmem:[%s61 + $0x20] sm:$0xff]
    %v67 = vld [vmem:[%s61 + $0x28] sm:$0xff]
    %v68 = vld [vmem:[%s61 + $0x30] sm:$0xff]
    %v69 = vld [vmem:[%s61 + $0x38] sm:$0xff]
    %v70 = vld [vmem:[%s61 + $0x40] sm:$0xff]
    %v71 = vld [vmem:[%s61 + $0x48] sm:$0xff]
    %v72 = vld [vmem:[%s61 + $0x50] sm:$0xff]
    %v73 = vld [vmem:[%s61 + $0x58] sm:$0xff]
    %v74 = vld [vmem:[%s61 + $0x60] sm:$0xff]
    %v75 = vld [vmem:[%s61 + $0x68] sm:$0xff]
    %v76 = vld [vmem:[%s61 + $0x70] sm:$0xff]
    %v77 = vld [vmem:[%s61 + $0x78] sm:$0xff]
    %v78 = vld [vmem:[%s61 + $0x80] sm:$0xff]
    %v79 = vld [vmem:[%s61 + $0x88] sm:$0xff]
    %v80 = vld [vmem:[%s61 + $0x90] sm:$0xff]
    %v81 = vld [vmem:[%s61 + $0x98] sm:$0xff]
    %v82 = vmul.f32 %v62, 0.3990503
    %v83 = vmul.f32 %v63, 0.3990503
    %v84 = vmul.f32 %v64, 0.3990503
    %v85 = vmul.f32 %v65, 0.3990503
    %v86 = vmul.f32 %v66, 0.3990503
    %v87 = vmul.f32 %v67, 0.3990503
    %v88 = vmul.f32 %v68, 0.3990503
    %v89 = vmul.f32 %v69, 0.3990503
    %v90 = vmul.f32 %v70, 0.3990503
    %v91 = vmul.f32 %v71, 0.3990503
    %v92 = vmul.f32 %v72, 0.3990503
    %v93 = vmul.f32 %v73, 0.3990503
    %v94 = vmul.f32 %v74, 0.3990503
    %v95 = vmul.f32 %v75, 0.3990503
    %v96 = vmul.f32 %v76, 0.3990503
    %v97 = vmul.f32 %v77, 0.3990503
    %v98 = vmul.f32 %v78, 0.3990503
    %v99 = vmul.f32 %v79, 0.3990503
    %v100 = vmul.f32 %v80, 0.3990503
    %v101 = vmul.f32 %v81, 0.3990503
    %s102 = scalar_lea.vmem [#allocation3], 32
    %v103 = vld [vmem:[%s102] sm:$0xff]
    %v104 = vld [vmem:[%s102 + $0x8] sm:$0xff]
    %v105 = vld [vmem:[%s102 + $0x10] sm:$0xff]
    %v106 = vld [vmem:[%s102 + $0x18] sm:$0xff]
    %v107 = vld [vmem:[%s102 + $0x20] sm:$0xff]
    %v108 = vld [vmem:[%s102 + $0x28] sm:$0xff]
    %v109 = vld [vmem:[%s102 + $0x30] sm:$0xff]
    %v110 = vld [vmem:[%s102 + $0x38] sm:$0xff]
    %v111 = vld [vmem:[%s102 + $0x40] sm:$0xff]
    %v112 = vld [vmem:[%s102 + $0x48] sm:$0xff]
    %v113 = vld [vmem:[%s102 + $0x50] sm:$0xff]
    %v114 = vld [vmem:[%s102 + $0x58] sm:$0xff]
    %v115 = vld [vmem:[%s102 + $0x60] sm:$0xff]
    %v116 = vld [vmem:[%s102 + $0x68] sm:$0xff]
    %v117 = vld [vmem:[%s102 + $0x70] sm:$0xff]
    %v118 = vld [vmem:[%s102 + $0x78] sm:$0xff]
    %v119 = vld [vmem:[%s102 + $0x80] sm:$0xff]
    %v120 = vld [vmem:[%s102 + $0x88] sm:$0xff]
    %v121 = vld [vmem:[%s102 + $0x90] sm:$0xff]
    %v122 = vld [vmem:[%s102 + $0x98] sm:$0xff]
    %s123 = scalar_lea.vmem [#allocation3], 64
    %v124 = vld [vmem:[%s123] sm:$0xff]
    %v125 = vld [vmem:[%s123 + $0x8] sm:$0xff]
    %v126 = vld [vmem:[%s123 + $0x10] sm:$0xff]
    %v127 = vld [vmem:[%s123 + $0x18] sm:$0xff]
    %v128 = vld [vmem:[%s123 + $0x20] sm:$0xff]
    %v129 = vld [vmem:[%s123 + $0x28] sm:$0xff]
    %v130 = vld [vmem:[%s123 + $0x30] sm:$0xff]
    %v131 = vld [vmem:[%s123 + $0x38] sm:$0xff]
    %v132 = vld [vmem:[%s123 + $0x40] sm:$0xff]
    %v133 = vld [vmem:[%s123 + $0x48] sm:$0xff]
    %v134 = vld [vmem:[%s123 + $0x50] sm:$0xff]
    %v135 = vld [vmem:[%s123 + $0x58] sm:$0xff]
    %v136 = vld [vmem:[%s123 + $0x60] sm:$0xff]
    %v137 = vld [vmem:[%s123 + $0x68] sm:$0xff]
    %v138 = vld [vmem:[%s123 + $0x70] sm:$0xff]
    %v139 = vld [vmem:[%s123 + $0x78] sm:$0xff]
    %v140 = vld [vmem:[%s123 + $0x80] sm:$0xff]
    %v141 = vld [vmem:[%s123 + $0x88] sm:$0xff]
    %v142 = vld [vmem:[%s123 + $0x90] sm:$0xff]
    %v143 = vld [vmem:[%s123 + $0x98] sm:$0xff]
    %v144 = vadd.f32 %v103, %v124
    %v145 = vadd.f32 %v104, %v125
    %v146 = vadd.f32 %v105, %v126
    %v147 = vadd.f32 %v106, %v127
    %v148 = vadd.f32 %v107, %v128
    %v149 = vadd.f32 %v108, %v129
    %v150 = vadd.f32 %v109, %v130
    %v151 = vadd.f32 %v110, %v131
    %v152 = vadd.f32 %v111, %v132
    %v153 = vadd.f32 %v112, %v133
    %v154 = vadd.f32 %v113, %v134
    %v155 = vadd.f32 %v114, %v135
    %v156 = vadd.f32 %v115, %v136
    %v157 = vadd.f32 %v116, %v137
    %v158 = vadd.f32 %v117, %v138
    %v159 = vadd.f32 %v118, %v139
    %v160 = vadd.f32 %v119, %v140
    %v161 = vadd.f32 %v120, %v141
    %v162 = vadd.f32 %v121, %v142
    %v163 = vadd.f32 %v122, %v143
    %v164 = vmul.f32 %v144, 0.24203622
    %v165 = vmul.f32 %v145, 0.24203622
    %v166 = vmul.f32 %v146, 0.24203622
    %v167 = vmul.f32 %v147, 0.24203622
    %v168 = vmul.f32 %v148, 0.24203622
    %v169 = vmul.f32 %v149, 0.24203622
    %v170 = vmul.f32 %v150, 0.24203622
    %v171 = vmul.f32 %v151, 0.24203622
    %v172 = vmul.f32 %v152, 0.24203622
    %v173 = vmul.f32 %v153, 0.24203622
    %v174 = vmul.f32 %v154, 0.24203622
    %v175 = vmul.f32 %v155, 0.24203622
    %v176 = vmul.f32 %v156, 0.24203622
    %v177 = vmul.f32 %v157, 0.24203622
    %v178 = vmul.f32 %v158, 0.24203622
    %v179 = vmul.f32 %v159, 0.24203622
    %v180 = vmul.f32 %v160, 0.24203622
    %v181 = vmul.f32 %v161, 0.24203622
    %v182 = vmul.f32 %v162, 0.24203622
    %v183 = vmul.f32 %v163, 0.24203622
    %v184 = vadd.f32 %v82, %v164
    %v185 = vadd.f32 %v83, %v165
    %v186 = vadd.f32 %v84, %v166
    %v187 = vadd.f32 %v85, %v167
    %v188 = vadd.f32 %v86, %v168
    %v189 = vadd.f32 %v87, %v169
    %v190 = vadd.f32 %v88, %v170
    %v191 = vadd.f32 %v89, %v171
    %v192 = vadd.f32 %v90, %v172
    %v193 = vadd.f32 %v91, %v173
    %v194 = vadd.f32 %v92, %v174
    %v195 = vadd.f32 %v93, %v175
    %v196 = vadd.f32 %v94, %v176
    %v197 = vadd.f32 %v95, %v177
    %v198 = vadd.f32 %v96, %v178
    %v199 = vadd.f32 %v97, %v179
    %v200 = vadd.f32 %v98, %v180
    %v201 = vadd.f32 %v99, %v181
    %v202 = vadd.f32 %v100, %v182
    %v203 = vadd.f32 %v101, %v183
    %s204 = scalar_lea.vmem [#allocation3], 16
    %v205 = vld [vmem:[%s204] sm:$0xff]
    %v206 = vld [vmem:[%s204 + $0x8] sm:$0xff]
    %v207 = vld [vmem:[%s204 + $0x10] sm:$0xff]
    %v208 = vld [vmem:[%s204 + $0x18] sm:$0xff]
    %v209 = vld [vmem:[%s204 + $0x20] sm:$0xff]
    %v210 = vld [vmem:[%s204 + $0x28] sm:$0xff]
    %v211 = vld [vmem:[%s204 + $0x30] sm:$0xff]
    %v212 = vld [vmem:[%s204 + $0x38] sm:$0xff]
    %v213 = vld [vmem:[%s204 + $0x40] sm:$0xff]
    %v214 = vld [vmem:[%s204 + $0x48] sm:$0xff]
    %v215 = vld [vmem:[%s204 + $0x50] sm:$0xff]
    %v216 = vld [vmem:[%s204 + $0x58] sm:$0xff]
    %v217 = vld [vmem:[%s204 + $0x60] sm:$0xff]
    %v218 = vld [vmem:[%s204 + $0x68] sm:$0xff]
    %v219 = vld [vmem:[%s204 + $0x70] sm:$0xff]
    %v220 = vld [vmem:[%s204 + $0x78] sm:$0xff]
    %v221 = vld [vmem:[%s204 + $0x80] sm:$0xff]
    %v222 = vld [vmem:[%s204 + $0x88] sm:$0xff]
    %v223 = vld [vmem:[%s204 + $0x90] sm:$0xff]
    %v224 = vld [vmem:[%s204 + $0x98] sm:$0xff]
    %s225 = scalar_lea.vmem [#allocation3], 80
    %v226 = vld [vmem:[%s225] sm:$0xff]
    %v227 = vld [vmem:[%s225 + $0x8] sm:$0xff]
    %v228 = vld [vmem:[%s225 + $0x10] sm:$0xff]
    %v229 = vld [vmem:[%s225 + $0x18] sm:$0xff]
    %v230 = vld [vmem:[%s225 + $0x20] sm:$0xff]
    %v231 = vld [vmem:[%s225 + $0x28] sm:$0xff]
    %v232 = vld [vmem:[%s225 + $0x30] sm:$0xff]
    %v233 = vld [vmem:[%s225 + $0x38] sm:$0xff]
    %v234 = vld [vmem:[%s225 + $0x40] sm:$0xff]
    %v235 = vld [vmem:[%s225 + $0x48] sm:$0xff]
    %v236 = vld [vmem:[%s225 + $0x50] sm:$0xff]
    %v237 = vld [vmem:[%s225 + $0x58] sm:$0xff]
    %v238 = vld [vmem:[%s225 + $0x60] sm:$0xff]
    %v239 = vld [vmem:[%s225 + $0x68] sm:$0xff]
    %v240 = vld [vmem:[%s225 + $0x70] sm:$0xff]
    %v241 = vld [vmem:[%s225 + $0x78] sm:$0xff]
    %v242 = vld [vmem:[%s225 + $0x80] sm:$0xff]
    %v243 = vld [vmem:[%s225 + $0x88] sm:$0xff]
    %v244 = vld [vmem:[%s225 + $0x90] sm:$0xff]
    %v245 = vld [vmem:[%s225 + $0x98] sm:$0xff]
    %v246 = vadd.f32 %v205, %v226
    %v247 = vadd.f32 %v206, %v227
    %v248 = vadd.f32 %v207, %v228
    %v249 = vadd.f32 %v208, %v229
    %v250 = vadd.f32 %v209, %v230
    %v251 = vadd.f32 %v210, %v231
    %v252 = vadd.f32 %v211, %v232
    %v253 = vadd.f32 %v212, %v233
    %v254 = vadd.f32 %v213, %v234
    %v255 = vadd.f32 %v214, %v235
    %v256 = vadd.f32 %v215, %v236
    %v257 = vadd.f32 %v216, %v237
    %v258 = vadd.f32 %v217, %v238
    %v259 = vadd.f32 %v218, %v239
    %v260 = vadd.f32 %v219, %v240
    %v261 = vadd.f32 %v220, %v241
    %v262 = vadd.f32 %v221, %v242
    %v263 = vadd.f32 %v222, %v243
    %v264 = vadd.f32 %v223, %v244
    %v265 = vadd.f32 %v224, %v245
    %v266 = vmul.f32 %v246, 0.054005586
    %v267 = vmul.f32 %v247, 0.054005586
    %v268 = vmul.f32 %v248, 0.054005586
    %v269 = vmul.f32 %v249, 0.054005586
    %v270 = vmul.f32 %v250, 0.054005586
    %v271 = vmul.f32 %v251, 0.054005586
    %v272 = vmul.f32 %v252, 0.054005586
    %v273 = vmul.f32 %v253, 0.054005586
    %v274 = vmul.f32 %v254, 0.054005586
    %v275 = vmul.f32 %v255, 0.054005586
    %v276 = vmul.f32 %v256, 0.054005586
    %v277 = vmul.f32 %v257, 0.054005586
    %v278 = vmul.f32 %v258, 0.054005586
    %v279 = vmul.f32 %v259, 0.054005586
    %v280 = vmul.f32 %v260, 0.054005586
    %v281 = vmul.f32 %v261, 0.054005586
    %v282 = vmul.f32 %v262, 0.054005586
    %v283 = vmul.f32 %v263, 0.054005586
    %v284 = vmul.f32 %v264, 0.054005586
    %v285 = vmul.f32 %v265, 0.054005586
    %v286 = vadd.f32 %v184, %v266
    %v287 = vadd.f32 %v185, %v267
    %v288 = vadd.f32 %v186, %v268
    %v289 = vadd.f32 %v187, %v269
    %v290 = vadd.f32 %v188, %v270
    %v291 = vadd.f32 %v189, %v271
    %v292 = vadd.f32 %v190, %v272
    %v293 = vadd.f32 %v191, %v273
    %v294 = vadd.f32 %v192, %v274
    %v295 = vadd.f32 %v193, %v275
    %v296 = vadd.f32 %v194, %v276
    %v297 = vadd.f32 %v195, %v277
    %v298 = vadd.f32 %v196, %v278
    %v299 = vadd.f32 %v197, %v279
    %v300 = vadd.f32 %v198, %v280
    %v301 = vadd.f32 %v199, %v281
    %v302 = vadd.f32 %v200, %v282
    %v303 = vadd.f32 %v201, %v283
    %v304 = vadd.f32 %v202, %v284
    %v305 = vadd.f32 %v203, %v285
    %v306 = vld [vmem:[#allocation3] sm:$0xff]
    %v307 = vld [vmem:[#allocation3 + $0x8] sm:$0xff]
    %v308 = vld [vmem:[#allocation3 + $0x10] sm:$0xff]
    %v309 = vld [vmem:[#allocation3 + $0x18] sm:$0xff]
    %v310 = vld [vmem:[#allocation3 + $0x20] sm:$0xff]
    %v311 = vld [vmem:[#allocation3 + $0x28] sm:$0xff]
    %v312 = vld [vmem:[#allocation3 + $0x30] sm:$0xff]
    %v313 = vld [vmem:[#allocation3 + $0x38] sm:$0xff]
    %v314 = vld [vmem:[#allocation3 + $0x40] sm:$0xff]
    %v315 = vld [vmem:[#allocation3 + $0x48] sm:$0xff]
    %v316 = vld [vmem:[#allocation3 + $0x50] sm:$0xff]
    %v317 = vld [vmem:[#allocation3 + $0x58] sm:$0xff]
    %v318 = vld [vmem:[#allocation3 + $0x60] sm:$0xff]
    %v319 = vld [vmem:[#allocation3 + $0x68] sm:$0xff]
    %v320 = vld [vmem:[#allocation3 + $0x70] sm:$0xff]
    %v321 = vld [vmem:[#allocation3 + $0x78] sm:$0xff]
    %v322 = vld [vmem:[#allocation3 + $0x80] sm:$0xff]
    %v323 = vld [vmem:[#allocation3 + $0x88] sm:$0xff]
    %v324 = vld [vmem:[#allocation3 + $0x90] sm:$0xff]
    %v325 = vld [vmem:[#allocation3 + $0x98] sm:$0xff]
    %s326 = scalar_lea.vmem [#allocation3], 96
    %v327 = vld [vmem:[%s326] sm:$0xff]
    %v328 = vld [vmem:[%s326 + $0x8] sm:$0xff]
    %v329 = vld [vmem:[%s326 + $0x10] sm:$0xff]
    %v330 = vld [vmem:[%s326 + $0x18] sm:$0xff]
    %v331 = vld [vmem:[%s326 + $0x20] sm:$0xff]
    %v332 = vld [vmem:[%s326 + $0x28] sm:$0xff]
    %v333 = vld [vmem:[%s326 + $0x30] sm:$0xff]
    %v334 = vld [vmem:[%s326 + $0x38] sm:$0xff]
    %v335 = vld [vmem:[%s326 + $0x40] sm:$0xff]
    %v336 = vld [vmem:[%s326 + $0x48] sm:$0xff]
    %v337 = vld [vmem:[%s326 + $0x50] sm:$0xff]
    %v338 = vld [vmem:[%s326 + $0x58] sm:$0xff]
    %v339 = vld [vmem:[%s326 + $0x60] sm:$0xff]
    %v340 = vld [vmem:[%s326 + $0x68] sm:$0xff]
    %v341 = vld [vmem:[%s326 + $0x70] sm:$0xff]
    %v342 = vld [vmem:[%s326 + $0x78] sm:$0xff]
    %v343 = vld [vmem:[%s326 + $0x80] sm:$0xff]
    %v344 = vld [vmem:[%s326 + $0x88] sm:$0xff]
    %v345 = vld [vmem:[%s326 + $0x90] sm:$0xff]
    %v346 = vld [vmem:[%s326 + $0x98] sm:$0xff]
    %v347 = vadd.f32 %v306, %v327
    %v348 = vadd.f32 %v307, %v328
    %v349 = vadd.f32 %v308, %v329
    %v350 = vadd.f32 %v309, %v330
    %v351 = vadd.f32 %v310, %v331
    %v352 = vadd.f32 %v311, %v332
    %v353 = vadd.f32 %v312, %v333
    %v354 = vadd.f32 %v313, %v334
    %v355 = vadd.f32 %v314, %v335
    %v356 = vadd.f32 %v315, %v336
    %v357 = vadd.f32 %v316, %v337
    %v358 = vadd.f32 %v317, %v338
    %v359 = vadd.f32 %v318, %v339
    %v360 = vadd.f32 %v319, %v340
    %v361 = vadd.f32 %v320, %v341
    %v362 = vadd.f32 %v321, %v342
    %v363 = vadd.f32 %v322, %v343
    %v364 = vadd.f32 %v323, %v344
    %v365 = vadd.f32 %v324, %v345
    %v366 = vadd.f32 %v325, %v346
    %v367 = vmul.f32 %v347, 0.004433048
    %v368 = vmul.f32 %v348, 0.004433048
    %v369 = vmul.f32 %v349, 0.004433048
    %v370 = vmul.f32 %v350, 0.004433048
    %v371 = vmul.f32 %v351, 0.004433048
    %v372 = vmul.f32 %v352, 0.004433048
    %v373 = vmul.f32 %v353, 0.004433048
    %v374 = vmul.f32 %v354, 0.004433048
    %v375 = vmul.f32 %v355, 0.004433048
    %v376 = vmul.f32 %v356, 0.004433048
    %v377 = vmul.f32 %v357, 0.004433048
    %v378 = vmul.f32 %v358, 0.004433048
    %v379 = vmul.f32 %v359, 0.004433048
    %v380 = vmul.f32 %v360, 0.004433048
    %v381 = vmul.f32 %v361, 0.004433048
    %v382 = vmul.f32 %v362, 0.004433048
    %v383 = vmul.f32 %v363, 0.004433048
    %v384 = vmul.f32 %v364, 0.004433048
    %v385 = vmul.f32 %v365, 0.004433048
    %v386 = vmul.f32 %v366, 0.004433048
    %v387 = vadd.f32 %v286, %v367
    %v388 = vadd.f32 %v287, %v368
    %v389 = vadd.f32 %v288, %v369
    %v390 = vadd.f32 %v289, %v370
    %v391 = vadd.f32 %v290, %v371
    %v392 = vadd.f32 %v291, %v372
    %v393 = vadd.f32 %v292, %v373
    %v394 = vadd.f32 %v293, %v374
    %v395 = vadd.f32 %v294, %v375
    %v396 = vadd.f32 %v295, %v376
    %v397 = vadd.f32 %v296, %v377
    %v398 = vadd.f32 %v297, %v378
    %v399 = vadd.f32 %v298, %v379
    %v400 = vadd.f32 %v299, %v380
    %v401 = vadd.f32 %v300, %v381
    %v402 = vadd.f32 %v301, %v382
    %v403 = vadd.f32 %v302, %v383
    %v404 = vadd.f32 %v303, %v384
    %v405 = vadd.f32 %v304, %v385
    %v406 = vadd.f32 %v305, %v386
    %s407 = scalar_lea.vmem [#allocation2], 96
    %408 = vst [vmem:[%s407 + $0x8] sm:$0xff] %v387
    %409 = vst [vmem:[%s407 + $0x10] sm:$0xff] %v388
    %410 = vst [vmem:[%s407 + $0x28] sm:$0xff] %v389
    %411 = vst [vmem:[%s407 + $0x30] sm:$0xff] %v390
    %412 = vst [vmem:[%s407 + $0x48] sm:$0xff] %v391
    %413 = vst [vmem:[%s407 + $0x50] sm:$0xff] %v392
    %414 = vst [vmem:[%s407 + $0x68] sm:$0xff] %v393
    %415 = vst [vmem:[%s407 + $0x70] sm:$0xff] %v394
    %416 = vst [vmem:[%s407 + $0x88] sm:$0xff] %v395
    %417 = vst [vmem:[%s407 + $0x90] sm:$0xff] %v396
    %418 = vst [vmem:[%s407 + $0xa8] sm:$0xff] %v397
    %419 = vst [vmem:[%s407 + $0xb0] sm:$0xff] %v398
    %420 = vst [vmem:[%s407 + $0xc8] sm:$0xff] %v399
    %421 = vst [vmem:[%s407 + $0xd0] sm:$0xff] %v400
    %422 = vst [vmem:[%s407 + $0xe8] sm:$0xff] %v401
    %423 = vst [vmem:[%s407 + $0xf0] sm:$0xff] %v402
    %424 = vst [vmem:[%s407 + $0x108] sm:$0xff] %v403
    %425 = vst [vmem:[%s407 + $0x110] sm:$0xff] %v404
    %426 = vst [vmem:[%s407 + $0x128] sm:$0xff] %v405
    %427 = vst [vmem:[%s407 + $0x130] sm:$0xff] %v406
    %v428 = vld [vmem:[#allocation3] sm:$0xff]
    %v429 = vld [vmem:[#allocation3 + $0x8] sm:$0xff]
    %v430 = vmul.f32 %v428, 0.3990503
    %v431 = vmul.f32 %v429, 0.3990503
    %v432 = vld [vmem:[%s204] sm:$0xff]
    %v433 = vld [vmem:[%s204 + $0x8] sm:$0xff]
    %v434 = vmul.f32 %v432, 0.24203622
    %v435 = vmul.f32 %v433, 0.24203622
    %v436 = vadd.f32 %v430, %v434
    %v437 = vadd.f32 %v431, %v435
    %v438 = vld [vmem:[%s102] sm:$0xff]
    %v439 = vld [vmem:[%s102 + $0x8] sm:$0xff]
    %v440 = vmul.f32 %v438, 0.054005586
    %v441 = vmul.f32 %v439, 0.054005586
    %v442 = vadd.f32 %v436, %v440
    %v443 = vadd.f32 %v437, %v441
    %v444 = vld [vmem:[%s61] sm:$0xff]
    %v445 = vld [vmem:[%s61 + $0x8] sm:$0xff]
    %v446 = vmul.f32 %v444, 0.004433048
    %v447 = vmul.f32 %v445, 0.004433048
    %v448 = vadd.f32 %v442, %v446
    %v449 = vadd.f32 %v443, %v447
    %450 = vst [vmem:[#allocation2 + $0x8] sm:$0xff] %v448
    %451 = vst [vmem:[#allocation2 + $0x10] sm:$0xff] %v449
    %v452 = vld [vmem:[#allocation3] sm:$0xff]
    %v453 = vld [vmem:[#allocation3 + $0x8] sm:$0xff]
    %v454 = vmul.f32 %v452, 0.24203622
    %v455 = vmul.f32 %v453, 0.24203622
    %v456 = vld [vmem:[%s204] sm:$0xff]
    %v457 = vld [vmem:[%s204 + $0x8] sm:$0xff]
    %v458 = vmul.f32 %v456, 0.3990503
    %v459 = vmul.f32 %v457, 0.3990503
    %v460 = vadd.f32 %v454, %v458
    %v461 = vadd.f32 %v455, %v459
    %v462 = vld [vmem:[%s102] sm:$0xff]
    %v463 = vld [vmem:[%s102 + $0x8] sm:$0xff]
    %v464 = vmul.f32 %v462, 0.24203622
    %v465 = vmul.f32 %v463, 0.24203622
    %v466 = vadd.f32 %v460, %v464
    %v467 = vadd.f32 %v461, %v465
    %v468 = vld [vmem:[%s61] sm:$0xff]
    %v469 = vld [vmem:[%s61 + $0x8] sm:$0xff]
    %v470 = vmul.f32 %v468, 0.054005586
    %v471 = vmul.f32 %v469, 0.054005586
    %v472 = vadd.f32 %v466, %v470
    %v473 = vadd.f32 %v467, %v471
    %v474 = vld [vmem:[%s123] sm:$0xff]
    %v475 = vld [vmem:[%s123 + $0x8] sm:$0xff]
    %v476 = vmul.f32 %v474, 0.004433048
    %v477 = vmul.f32 %v475, 0.004433048
    %v478 = vadd.f32 %v472, %v476
    %v479 = vadd.f32 %v473, %v477
    %s480 = scalar_lea.vmem [#allocation2], 32
    %481 = vst [vmem:[%s480 + $0x8] sm:$0xff] %v478
    %482 = vst [vmem:[%s480 + $0x10] sm:$0xff] %v479
    %v483 = vld [vmem:[#allocation3] sm:$0xff]
    %v484 = vld [vmem:[#allocation3 + $0x8] sm:$0xff]
    %v485 = vmul.f32 %v483, 0.054005586
    %v486 = vmul.f32 %v484, 0.054005586
    %v487 = vld [vmem:[%s204] sm:$0xff]
    %v488 = vld [vmem:[%s204 + $0x8] sm:$0xff]
    %v489 = vmul.f32 %v487, 0.24203622
    %v490 = vmul.f32 %v488, 0.24203622
    %v491 = vadd.f32 %v485, %v489
    %v492 = vadd.f32 %v486, %v490
    %v493 = vld [vmem:[%s102] sm:$0xff]
    %v494 = vld [vmem:[%s102 + $0x8] sm:$0xff]
    %v495 = vmul.f32 %v493, 0.3990503
    %v496 = vmul.f32 %v494, 0.3990503
    %v497 = vadd.f32 %v491, %v495
    %v498 = vadd.f32 %v492, %v496
    %v499 = vld [vmem:[%s61] sm:$0xff]
    %v500 = vld [vmem:[%s61 + $0x8] sm:$0xff]
    %v501 = vmul.f32 %v499, 0.24203622
    %v502 = vmul.f32 %v500, 0.24203622
    %v503 = vadd.f32 %v497, %v501
    %v504 = vadd.f32 %v498, %v502
    %v505 = vld [vmem:[%s123] sm:$0xff]
    %v506 = vld [vmem:[%s123 + $0x8] sm:$0xff]
    %v507 = vmul.f32 %v505, 0.054005586
    %v508 = vmul.f32 %v506, 0.054005586
    %v509 = vadd.f32 %v503, %v507
    %v510 = vadd.f32 %v504, %v508
    %v511 = vld [vmem:[%s225] sm:$0xff]
    %v512 = vld [vmem:[%s225 + $0x8] sm:$0xff]
    %v513 = vmul.f32 %v511, 0.004433048
    %v514 = vmul.f32 %v512, 0.004433048
    %v515 = vadd.f32 %v509, %v513
    %v516 = vadd.f32 %v510, %v514
    %s517 = scalar_lea.vmem [#allocation2], 64
    %518 = vst [vmem:[%s517 + $0x8] sm:$0xff] %v515
    %519 = vst [vmem:[%s517 + $0x10] sm:$0xff] %v516
    %s520 = scalar_lea.vmem [#allocation3], 160
    %v521 = vld [vmem:[%s520] sm:$0xff]
    %v522 = vld [vmem:[%s520 + $0x8] sm:$0xff]
    %v523 = vmul.f32 %v521, 0.004433048
    %v524 = vmul.f32 %v522, 0.004433048
    %s525 = scalar_lea.vmem [#allocation3], 176
    %v526 = vld [vmem:[%s525] sm:$0xff]
    %v527 = vld [vmem:[%s525 + $0x8] sm:$0xff]
    %v528 = vmul.f32 %v526, 0.054005586
    %v529 = vmul.f32 %v527, 0.054005586
    %v530 = vadd.f32 %v523, %v528
    %v531 = vadd.f32 %v524, %v529
    %s532 = scalar_lea.vmem [#allocation3], 192
    %v533 = vld [vmem:[%s532] sm:$0xff]
    %v534 = vld [vmem:[%s532 + $0x8] sm:$0xff]
    %v535 = vmul.f32 %v533, 0.24203622
    %v536 = vmul.f32 %v534, 0.24203622
    %v537 = vadd.f32 %v530, %v535
    %v538 = vadd.f32 %v531, %v536
    %s539 = scalar_lea.vmem [#allocation3], 208
    %v540 = vld [vmem:[%s539] sm:$0xff]
    %v541 = vld [vmem:[%s539 + $0x8] sm:$0xff]
    %v542 = vmul.f32 %v540, 0.3990503
    %v543 = vmul.f32 %v541, 0.3990503
    %v544 = vadd.f32 %v537, %v542
    %v545 = vadd.f32 %v538, %v543
    %s546 = scalar_lea.vmem [#allocation3], 224
    %v547 = vld [vmem:[%s546] sm:$0xff]
    %v548 = vld [vmem:[%s546 + $0x8] sm:$0xff]
    %v549 = vmul.f32 %v547, 0.24203622
    %v550 = vmul.f32 %v548, 0.24203622
    %v551 = vadd.f32 %v544, %v549
    %v552 = vadd.f32 %v545, %v550
    %s553 = scalar_lea.vmem [#allocation3], 240
    %v554 = vld [vmem:[%s553] sm:$0xff]
    %v555 = vld [vmem:[%s553 + $0x8] sm:$0xff]
    %v556 = vmul.f32 %v554, 0.054005586
    %v557 = vmul.f32 %v555, 0.054005586
    %v558 = vadd.f32 %v551, %v556
    %v559 = vadd.f32 %v552, %v557
    %s560 = scalar_lea.vmem [#allocation2], 416
    %561 = vst [vmem:[%s560 + $0x8] sm:$0xff] %v558
    %562 = vst [vmem:[%s560 + $0x10] sm:$0xff] %v559
    %v563 = vld [vmem:[%s525] sm:$0xff]
    %v564 = vld [vmem:[%s525 + $0x8] sm:$0xff]
    %v565 = vmul.f32 %v563, 0.004433048
    %v566 = vmul.f32 %v564, 0.004433048
    %v567 = vld [vmem:[%s532] sm:$0xff]
    %v568 = vld [vmem:[%s532 + $0x8] sm:$0xff]
    %v569 = vmul.f32 %v567, 0.054005586
    %v570 = vmul.f32 %v568, 0.054005586
    %v571 = vadd.f32 %v565, %v569
    %v572 = vadd.f32 %v566, %v570
    %v573 = vld [vmem:[%s539] sm:$0xff]
    %v574 = vld [vmem:[%s539 + $0x8] sm:$0xff]
    %v575 = vmul.f32 %v573, 0.24203622
    %v576 = vmul.f32 %v574, 0.24203622
    %v577 = vadd.f32 %v571, %v575
    %v578 = vadd.f32 %v572, %v576
    %v579 = vld [vmem:[%s546] sm:$0xff]
    %v580 = vld [vmem:[%s546 + $0x8] sm:$0xff]
    %v581 = vmul.f32 %v579, 0.3990503
    %v582 = vmul.f32 %v580, 0.3990503
    %v583 = vadd.f32 %v577, %v581
    %v584 = vadd.f32 %v578, %v582
    %v585 = vld [vmem:[%s553] sm:$0xff]
    %v586 = vld [vmem:[%s553 + $0x8] sm:$0xff]
    %v587 = vmul.f32 %v585, 0.24203622
    %v588 = vmul.f32 %v586, 0.24203622
    %v589 = vadd.f32 %v583, %v587
    %v590 = vadd.f32 %v584, %v588
    %s591 = scalar_lea.vmem [#allocation2], 448
    %592 = vst [vmem:[%s591 + $0x8] sm:$0xff] %v589
    %593 = vst [vmem:[%s591 + $0x10] sm:$0xff] %v590
    %v594 = vld [vmem:[%s532] sm:$0xff]
    %v595 = vld [vmem:[%s532 + $0x8] sm:$0xff]
    %v596 = vmul.f32 %v594, 0.004433048
    %v597 = vmul.f32 %v595, 0.004433048
    %v598 = vld [vmem:[%s539] sm:$0xff]
    %v599 = vld [vmem:[%s539 + $0x8] sm:$0xff]
    %v600 = vmul.f32 %v598, 0.054005586
    %v601 = vmul.f32 %v599, 0.054005586
    %v602 = vadd.f32 %v596, %v600
    %v603 = vadd.f32 %v597, %v601
    %v604 = vld [vmem:[%s546] sm:$0xff]
    %v605 = vld [vmem:[%s546 + $0x8] sm:$0xff]
    %v606 = vmul.f32 %v604, 0.24203622
    %v607 = vmul.f32 %v605, 0.24203622
    %v608 = vadd.f32 %v602, %v606
    %v609 = vadd.f32 %v603, %v607
    %v610 = vld [vmem:[%s553] sm:$0xff]
    %v611 = vld [vmem:[%s553 + $0x8] sm:$0xff]
    %v612 = vmul.f32 %v610, 0.3990503
    %v613 = vmul.f32 %v611, 0.3990503
    %v614 = vadd.f32 %v608, %v612
    %v615 = vadd.f32 %v609, %v613
    %s616 = scalar_lea.vmem [#allocation2], 480
    %617 = vst [vmem:[%s616 + $0x8] sm:$0xff] %v614
    %618 = vst [vmem:[%s616 + $0x10] sm:$0xff] %v615
    %v619 = vld [vmem:[#allocation2 + $0x8] sm:$0xff]
    %v620 = vld [vmem:[#allocation2 + $0x10] sm:$0xff]
    %v621 = vld [vmem:[#allocation2 + $0x28] sm:$0xff]
    %v622 = vld [vmem:[#allocation2 + $0x30] sm:$0xff]
    %v623 = vld [vmem:[#allocation2 + $0x48] sm:$0xff]
    %v624 = vld [vmem:[#allocation2 + $0x50] sm:$0xff]
    %v625 = vld [vmem:[#allocation2 + $0x68] sm:$0xff]
    %v626 = vld [vmem:[#allocation2 + $0x70] sm:$0xff]
    %v627 = vld [vmem:[#allocation2 + $0x88] sm:$0xff]
    %v628 = vld [vmem:[#allocation2 + $0x90] sm:$0xff]
    %v629 = vld [vmem:[#allocation2 + $0xa8] sm:$0xff]
    %v630 = vld [vmem:[#allocation2 + $0xb0] sm:$0xff]
    %v631 = vld [vmem:[#allocation2 + $0xc8] sm:$0xff]
    %v632 = vld [vmem:[#allocation2 + $0xd0] sm:$0xff]
    %v633 = vld [vmem:[#allocation2 + $0xe8] sm:$0xff]
    %v634 = vld [vmem:[#allocation2 + $0xf0] sm:$0xff]
    %v635 = vld [vmem:[#allocation2 + $0x108] sm:$0xff]
    %v636 = vld [vmem:[#allocation2 + $0x110] sm:$0xff]
    %v637 = vld [vmem:[#allocation2 + $0x128] sm:$0xff]
    %v638 = vld [vmem:[#allocation2 + $0x130] sm:$0xff]
    %v639 = vld [vmem:[#allocation2 + $0x148] sm:$0xff]
    %v640 = vld [vmem:[#allocation2 + $0x150] sm:$0xff]
    %v641 = vld [vmem:[#allocation2 + $0x168] sm:$0xff]
    %v642 = vld [vmem:[#allocation2 + $0x170] sm:$0xff]
    %v643 = vld [vmem:[#allocation2 + $0x188] sm:$0xff]
    %v644 = vld [vmem:[#allocation2 + $0x190] sm:$0xff]
    %v645 = vld [vmem:[#allocation2 + $0x1a8] sm:$0xff]
    %v646 = vld [vmem:[#allocation2 + $0x1b0] sm:$0xff]
    %v647 = vld [vmem:[#allocation2 + $0x1c8] sm:$0xff]
    %v648 = vld [vmem:[#allocation2 + $0x1d0] sm:$0xff]
    %v649 = vld [vmem:[#allocation2 + $0x1e8] sm:$0xff]
    %v650 = vld [vmem:[#allocation2 + $0x1f0] sm:$0xff]
    %v651 = vmul.f32 %v619, 0.3990503
    %v652 = vmul.f32 %v620, 0.3990503
    %v653 = vmul.f32 %v621, 0.3990503
    %v654 = vmul.f32 %v622, 0.3990503
    %v655 = vmul.f32 %v623, 0.3990503
    %v656 = vmul.f32 %v624, 0.3990503
    %v657 = vmul.f32 %v625, 0.3990503
    %v658 = vmul.f32 %v626, 0.3990503
    %v659 = vmul.f32 %v627, 0.3990503
    %v660 = vmul.f32 %v628, 0.3990503
    %v661 = vmul.f32 %v629, 0.3990503
    %v662 = vmul.f32 %v630, 0.3990503
    %v663 = vmul.f32 %v631, 0.3990503
    %v664 = vmul.f32 %v632, 0.3990503
    %v665 = vmul.f32 %v633, 0.3990503
    %v666 = vmul.f32 %v634, 0.3990503
    %v667 = vmul.f32 %v635, 0.3990503
    %v668 = vmul.f32 %v636, 0.3990503
    %v669 = vmul.f32 %v637, 0.3990503
    %v670 = vmul.f32 %v638, 0.3990503
    %v671 = vmul.f32 %v639, 0.3990503
    %v672 = vmul.f32 %v640, 0.3990503
    %v673 = vmul.f32 %v641, 0.3990503
    %v674 = vmul.f32 %v642, 0.3990503
    %v675 = vmul.f32 %v643, 0.3990503
    %v676 = vmul.f32 %v644, 0.3990503
    %v677 = vmul.f32 %v645, 0.3990503
    %v678 = vmul.f32 %v646, 0.3990503
    %v679 = vmul.f32 %v647, 0.3990503
    %v680 = vmul.f32 %v648, 0.3990503
    %v681 = vmul.f32 %v649, 0.3990503
    %v682 = vmul.f32 %v650, 0.3990503
    %v683 = vld [vmem:[#allocation2 + $0x7] sm:$0xff]
    %v684 = vld [vmem:[#allocation2 + $0xf] sm:$0xff]
    %v685 = vld [vmem:[#allocation2 + $0x27] sm:$0xff]
    %v686 = vld [vmem:[#allocation2 + $0x2f] sm:$0xff]
    %v687 = vld [vmem:[#allocation2 + $0x47] sm:$0xff]
    %v688 = vld [vmem:[#allocation2 + $0x4f] sm:$0xff]
    %v689 = vld [vmem:[#allocation2 + $0x67] sm:$0xff]
    %v690 = vld [vmem:[#allocation2 + $0x6f] sm:$0xff]
    %v691 = vld [vmem:[#allocation2 + $0x87] sm:$0xff]
    %v692 = vld [vmem:[#allocation2 + $0x8f] sm:$0xff]
    %v693 = vld [vmem:[#allocation2 + $0xa7] sm:$0xff]
    %v694 = vld [vmem:[#allocation2 + $0xaf] sm:$0xff]
    %v695 = vld [vmem:[#allocation2 + $0xc7] sm:$0xff]
    %v696 = vld [vmem:[#allocation2 + $0xcf] sm:$0xff]
    %v697 = vld [vmem:[#allocation2 + $0xe7] sm:$0xff]
    %v698 = vld [vmem:[#allocation2 + $0xef] sm:$0xff]
    %v699 = vld [vmem:[#allocation2 + $0x107] sm:$0xff]
    %v700 = vld [vmem:[#allocation2 + $0x10f] sm:$0xff]
    %v701 = vld [vmem:[#allocation2 + $0x127] sm:$0xff]
    %v702 = vld [vmem:[#allocation2 + $0x12f] sm:$0xff]
    %v703 = vld [vmem:[#allocation2 + $0x147] sm:$0xff]
    %v704 = vld [vmem:[#allocation2 + $0x14f] sm:$0xff]
    %v705 = vld [vmem:[#allocation2 + $0x167] sm:$0xff]
    %v706 = vld [vmem:[#allocation2 + $0x16f] sm:$0xff]
    %v707 = vld [vmem:[#allocation2 + $0x187] sm:$0xff]
    %v708 = vld [vmem:[#allocation2 + $0x18f] sm:$0xff]
    %v709 = vld [vmem:[#allocation2 + $0x1a7] sm:$0xff]
    %v710 = vld [vmem:[#allocation2 + $0x1af] sm:$0xff]
    %v711 = vld [vmem:[#allocation2 + $0x1c7] sm:$0xff]
    %v712 = vld [vmem:[#allocation2 + $0x1cf] sm:$0xff]
    %v713 = vld [vmem:[#allocation2 + $0x1e7] sm:$0xff]
    %v714 = vld [vmem:[#allocation2 + $0x1ef] sm:$0xff]
    %v715 = vld [vmem:[#allocation2 + $0x9] sm:$0xff]
    %v716 = vld [vmem:[#allocation2 + $0x11] sm:$0xff]
    %v717 = vld [vmem:[#allocation2 + $0x29] sm:$0xff]
    %v718 = vld [vmem:[#allocation2 + $0x31] sm:$0xff]
    %v719 = vld [vmem:[#allocation2 + $0x49] sm:$0xff]
    %v720 = vld [vmem:[#allocation2 + $0x51] sm:$0xff]
    %v721 = vld [vmem:[#allocation2 + $0x69] sm:$0xff]
    %v722 = vld [vmem:[#allocation2 + $0x71] sm:$0xff]
    %v723 = vld [vmem:[#allocation2 + $0x89] sm:$0xff]
    %v724 = vld [vmem:[#allocation2 + $0x91] sm:$0xff]
    %v725 = vld [vmem:[#allocation2 + $0xa9] sm:$0xff]
    %v726 = vld [vmem:[#allocation2 + $0xb1] sm:$0xff]
    %v727 = vld [vmem:[#allocation2 + $0xc9] sm:$0xff]
    %v728 = vld [vmem:[#allocation2 + $0xd1] sm:$0xff]
    %v729 = vld [vmem:[#allocation2 + $0xe9] sm:$0xff]
    %v730 = vld [vmem:[#allocation2 + $0xf1] sm:$0xff]
    %v731 = vld [vmem:[#allocation2 + $0x109] sm:$0xff]
    %v732 = vld [vmem:[#allocation2 + $0x111] sm:$0xff]
    %v733 = vld [vmem:[#allocation2 + $0x129] sm:$0xff]
    %v734 = vld [vmem:[#allocation2 + $0x131] sm:$0xff]
    %v735 = vld [vmem:[#allocation2 + $0x149] sm:$0xff]
    %v736 = vld [vmem:[#allocation2 + $0x151] sm:$0xff]
    %v737 = vld [vmem:[#allocation2 + $0x169] sm:$0xff]
    %v738 = vld [vmem:[#allocation2 + $0x171] sm:$0xff]
    %v739 = vld [vmem:[#allocation2 + $0x189] sm:$0xff]
    %v740 = vld [vmem:[#allocation2 + $0x191] sm:$0xff]
    %v741 = vld [vmem:[#allocation2 + $0x1a9] sm:$0xff]
    %v742 = vld [vmem:[#allocation2 + $0x1b1] sm:$0xff]
    %v743 = vld [vmem:[#allocation2 + $0x1c9] sm:$0xff]
    %v744 = vld [vmem:[#allocation2 + $0x1d1] sm:$0xff]
    %v745 = vld [vmem:[#allocation2 + $0x1e9] sm:$0xff]
    %v746 = vld [vmem:[#allocation2 + $0x1f1] sm:$0xff]
    %v747 = vadd.f32 %v683, %v715
    %v748 = vadd.f32 %v684, %v716
    %v749 = vadd.f32 %v685, %v717
    %v750 = vadd.f32 %v686, %v718
    %v751 = vadd.f32 %v687, %v719
    %v752 = vadd.f32 %v688, %v720
    %v753 = vadd.f32 %v689, %v721
    %v754 = vadd.f32 %v690, %v722
    %v755 = vadd.f32 %v691, %v723
    %v756 = vadd.f32 %v692, %v724
    %v757 = vadd.f32 %v693, %v725
    %v758 = vadd.f32 %v694, %v726
    %v759 = vadd.f32 %v695, %v727
    %v760 = vadd.f32 %v696, %v728
    %v761 = vadd.f32 %v697, %v729
    %v762 = vadd.f32 %v698, %v730
    %v763 = vadd.f32 %v699, %v731
    %v764 = vadd.f32 %v700, %v732
    %v765 = vadd.f32 %v701, %v733
    %v766 = vadd.f32 %v702, %v734
    %v767 = vadd.f32 %v703, %v735
    %v768 = vadd.f32 %v704, %v736
    %v769 = vadd.f32 %v705, %v737
    %v770 = vadd.f32 %v706, %v738
    %v771 = vadd.f32 %v707, %v739
    %v772 = vadd.f32 %v708, %v740
    %v773 = vadd.f32 %v709, %v741
    %v774 = vadd.f32 %v710, %v742
    %v775 = vadd.f32 %v711, %v743
    %v776 = vadd.f32 %v712, %v744
    %v777 = vadd.f32 %v713, %v745
    %v778 = vadd.f32 %v714, %v746
    %v779 = vmul.f32 %v747, 0.24203622
    %v780 = vmul.f32 %v748, 0.24203622
    %v781 = vmul.f32 %v749, 0.24203622
    %v782 = vmul.f32 %v750, 0.24203622
    %v783 = vmul.f32 %v751, 0.24203622
    %v784 = vmul.f32 %v752, 0.24203622
    %v785 = vmul.f32 %v753, 0.24203622
    %v786 = vmul.f32 %v754, 0.24203622
    %v787 = vmul.f32 %v755, 0.24203622
    %v788 = vmul.f32 %v756, 0.24203622
    %v789 = vmul.f32 %v757, 0.24203622
    %v790 = vmul.f32 %v758, 0.24203622
    %v791 = vmul.f32 %v759, 0.24203622
    %v792 = vmul.f32 %v760, 0.24203622
    %v793 = vmul.f32 %v761, 0.24203622
    %v794 = vmul.f32 %v762, 0.24203622
    %v795 = vmul.f32 %v763, 0.24203622
    %v796 = vmul.f32 %v764, 0.24203622
    %v797 = vmul.f32 %v765, 0.24203622
    %v798 = vmul.f32 %v766, 0.24203622
    %v799 = vmul.f32 %v767, 0.24203622
    %v800 = vmul.f32 %v768, 0.24203622
    %v801 = vmul.f32 %v769, 0.24203622
    %v802 = vmul.f32 %v770, 0.24203622
    %v803 = vmul.f32 %v771, 0.24203622
    %v804 = vmul.f32 %v772, 0.24203622
    %v805 = vmul.f32 %v773, 0.24203622
    %v806 = vmul.f32 %v774, 0.24203622
    %v807 = vmul.f32 %v775, 0.24203622
    %v808 = vmul.f32 %v776, 0.24203622
    %v809 = vmul.f32 %v777, 0.24203622
    %v810 = vmul.f32 %v778, 0.24203622
    %v811 = vadd.f32 %v651, %v779
    %v812 = vadd.f32 %v652, %v780
    %v813 = vadd.f32 %v653, %v781
    %v814 = vadd.f32 %v654, %v782
    %v815 = vadd.f32 %v655, %v783
    %v816 = vadd.f32 %v656, %v784
    %v817 = vadd.f32 %v657, %v785
    %v818 = vadd.f32 %v658, %v786
    %v819 = vadd.f32 %v659, %v787
    %v820 = vadd.f32 %v660, %v788
    %v821 = vadd.f32 %v661, %v789
    %v822 = vadd.f32 %v662, %v790
    %v823 = vadd.f32 %v663, %v791
    %v824 = vadd.f32 %v664, %v792
    %v825 = vadd.f32 %v665, %v793
    %v826 = vadd.f32 %v666, %v794
    %v827 = vadd.f32 %v667, %v795
    %v828 = vadd.f32 %v668, %v796
    %v829 = vadd.f32 %v669, %v797
    %v830 = vadd.f32 %v670, %v798
    %v831 = vadd.f32 %v671, %v799
    %v832 = vadd.f32 %v672, %v800
    %v833 = vadd.f32 %v673, %v801
    %v834 = vadd.f32 %v674, %v802
    %v835 = vadd.f32 %v675, %v803
    %v836 = vadd.f32 %v676, %v804
    %v837 = vadd.f32 %v677, %v805
    %v838 = vadd.f32 %v678, %v806
    %v839 = vadd.f32 %v679, %v807
    %v840 = vadd.f32 %v680, %v808
    %v841 = vadd.f32 %v681, %v809
    %v842 = vadd.f32 %v682, %v810
    %v843 = vld [vmem:[#allocation2 + $0x6] sm:$0xff]
    %v844 = vld [vmem:[#allocation2 + $0xe] sm:$0xff]
    %v845 = vld [vmem:[#allocation2 + $0x26] sm:$0xff]
    %v846 = vld [vmem:[#allocation2 + $0x2e] sm:$0xff]
    %v847 = vld [vmem:[#allocation2 + $0x46] sm:$0xff]
    %v848 = vld [vmem:[#allocation2 + $0x4e] sm:$0xff]
    %v849 = vld [vmem:[#allocation2 + $0x66] sm:$0xff]
    %v850 = vld [vmem:[#allocation2 + $0x6e] sm:$0xff]
    %v851 = vld [vmem:[#allocation2 + $0x86] sm:$0xff]
    %v852 = vld [vmem:[#allocation2 + $0x8e] sm:$0xff]
    %v853 = vld [vmem:[#allocation2 + $0xa6] sm:$0xff]
    %v854 = vld [vmem:[#allocation2 + $0xae] sm:$0xff]
    %v855 = vld [vmem:[#allocation2 + $0xc6] sm:$0xff]
    %v856 = vld [vmem:[#allocation2 + $0xce] sm:$0xff]
    %v857 = vld [vmem:[#allocation2 + $0xe6] sm:$0xff]
    %v858 = vld [vmem:[#allocation2 + $0xee] sm:$0xff]
    %v859 = vld [vmem:[#allocation2 + $0x106] sm:$0xff]
    %v860 = vld [vmem:[#allocation2 + $0x10e] sm:$0xff]
    %v861 = vld [vmem:[#allocation2 + $0x126] sm:$0xff]
    %v862 = vld [vmem:[#allocation2 + $0x12e] sm:$0xff]
    %v863 = vld [vmem:[#allocation2 + $0x146] sm:$0xff]
    %v864 = vld [vmem:[#allocation2 + $0x14e] sm:$0xff]
    %v865 = vld [vmem:[#allocation2 + $0x166] sm:$0xff]
    %v866 = vld [vmem:[#allocation2 + $0x16e] sm:$0xff]
    %v867 = vld [vmem:[#allocation2 + $0x186] sm:$0xff]
    %v868 = vld [vmem:[#allocation2 + $0x18e] sm:$0xff]
    %v869 = vld [vmem:[#allocation2 + $0x1a6] sm:$0xff]
    %v870 = vld [vmem:[#allocation2 + $0x1ae] sm:$0xff]
    %v871 = vld [vmem:[#allocation2 + $0x1c6] sm:$0xff]
    %v872 = vld [vmem:[#allocation2 + $0x1ce] sm:$0xff]
    %v873 = vld [vmem:[#allocation2 + $0x1e6] sm:$0xff]
    %v874 = vld [vmem:[#allocation2 + $0x1ee] sm:$0xff]
    %v875 = vld [vmem:[#allocation2 + $0xa] sm:$0xff]
    %v876 = vld [vmem:[#allocation2 + $0x12] sm:$0xff]
    %v877 = vld [vmem:[#allocation2 + $0x2a] sm:$0xff]
    %v878 = vld [vmem:[#allocation2 + $0x32] sm:$0xff]
    %v879 = vld [vmem:[#allocation2 + $0x4a] sm:$0xff]
    %v880 = vld [vmem:[#allocation2 + $0x52] sm:$0xff]
    %v881 = vld [vmem:[#allocation2 + $0x6a] sm:$0xff]
    %v882 = vld [vmem:[#allocation2 + $0x72] sm:$0xff]
    %v883 = vld [vmem:[#allocation2 + $0x8a] sm:$0xff]
    %v884 = vld [vmem:[#allocation2 + $0x92] sm:$0xff]
    %v885 = vld [vmem:[#allocation2 + $0xaa] sm:$0xff]
    %v886 = vld [vmem:[#allocation2 + $0xb2] sm:$0xff]
    %v887 = vld [vmem:[#allocation2 + $0xca] sm:$0xff]
    %v888 = vld [vmem:[#allocation2 + $0xd2] sm:$0xff]
    %v889 = vld [vmem:[#allocation2 + $0xea] sm:$0xff]
    %v890 = vld [vmem:[#allocation2 + $0xf2] sm:$0xff]
    %v891 = vld [vmem:[#allocation2 + $0x10a] sm:$0xff]
    %v892 = vld [vmem:[#allocation2 + $0x112] sm:$0xff]
    %v893 = vld [vmem:[#allocation2 + $0x12a] sm:$0xff]
    %v894 = vld [vmem:[#allocation2 + $0x132] sm:$0xff]
    %v895 = vld [vmem:[#allocation2 + $0x14a] sm:$0xff]
    %v896 = vld [vmem:[#allocation2 + $0x152] sm:$0xff]
    %v897 = vld [vmem:[#allocation2 + $0x16a] sm:$0xff]
    %v898 = vld [vmem:[#allocation2 + $0x172] sm:$0xff]
    %v899 = vld [vmem:[#allocation2 + $0x18a] sm:$0xff]
    %v900 = vld [vmem:[#allocation2 + $0x192] sm:$0xff]
    %v901 = vld [vmem:[#allocation2 + $0x1aa] sm:$0xff]
    %v902 = vld [vmem:[#allocation2 + $0x1b2] sm:$0xff]
    %v903 = vld [vmem:[#allocation2 + $0x1ca] sm:$0xff]
    %v904 = vld [vmem:[#allocation2 + $0x1d2] sm:$0xff]
    %v905 = vld [vmem:[#allocation2 + $0x1ea] sm:$0xff]
    %v906 = vld [vmem:[#allocation2 + $0x1f2] sm:$0xff]
    %v907 = vadd.f32 %v843, %v875
    %v908 = vadd.f32 %v844, %v876
    %v909 = vadd.f32 %v845, %v877
    %v910 = vadd.f32 %v846, %v878
    %v911 = vadd.f32 %v847, %v879
    %v912 = vadd.f32 %v848, %v880
    %v913 = vadd.f32 %v849, %v881
    %v914 = vadd.f32 %v850, %v882
    %v915 = vadd.f32 %v851, %v883
    %v916 = vadd.f32 %v852, %v884
    %v917 = vadd.f32 %v853, %v885
    %v918 = vadd.f32 %v854, %v886
    %v919 = vadd.f32 %v855, %v887
    %v920 = vadd.f32 %v856, %v888
    %v921 = vadd.f32 %v857, %v889
    %v922 = vadd.f32 %v858, %v890
    %v923 = vadd.f32 %v859, %v891
    %v924 = vadd.f32 %v860, %v892
    %v925 = vadd.f32 %v861, %v893
    %v926 = vadd.f32 %v862, %v894
    %v927 = vadd.f32 %v863, %v895
    %v928 = vadd.f32 %v864, %v896
    %v929 = vadd.f32 %v865, %v897
    %v930 = vadd.f32 %v866, %v898
    %v931 = vadd.f32 %v867, %v899
    %v932 = vadd.f32 %v868, %v900
    %v933 = vadd.f32 %v869, %v901
    %v934 = vadd.f32 %v870, %v902
    %v935 = vadd.f32 %v871, %v903
    %v936 = vadd.f32 %v872, %v904
    %v937 = vadd.f32 %v873, %v905
    %v938 = vadd.f32 %v874, %v906
    %v939 = vmul.f32 %v907, 0.054005586
    %v940 = vmul.f32 %v908, 0.054005586
    %v941 = vmul.f32 %v909, 0.054005586
    %v942 = vmul.f32 %v910, 0.054005586
    %v943 = vmul.f32 %v911, 0.054005586
    %v944 = vmul.f32 %v912, 0.054005586
    %v945 = vmul.f32 %v913, 0.054005586
    %v946 = vmul.f32 %v914, 0.054005586
    %v947 = vmul.f32 %v915, 0.054005586
    %v948 = vmul.f32 %v916, 0.054005586
    %v949 = vmul.f32 %v917, 0.054005586
    %v950 = vmul.f32 %v918, 0.054005586
    %v951 = vmul.f32 %v919, 0.054005586
    %v952 = vmul.f32 %v920, 0.054005586
    %v953 = vmul.f32 %v921, 0.054005586
    %v954 = vmul.f32 %v922, 0.054005586
    %v955 = vmul.f32 %v923, 0.054005586
    %v956 = vmul.f32 %v924, 0.054005586
    %v957 = vmul.f32 %v925, 0.054005586
    %v958 = vmul.f32 %v926, 0.054005586
    %v959 = vmul.f32 %v927, 0.054005586
    %v960 = vmul.f32 %v928, 0.054005586
    %v961 = vmul.f32 %v929, 0.054005586
    %v962 = vmul.f32 %v930, 0.054005586
    %v963 = vmul.f32 %v931, 0.054005586
    %v964 = vmul.f32 %v932, 0.054005586
    %v965 = vmul.f32 %v933, 0.054005586
    %v966 = vmul.f32 %v934, 0.054005586
    %v967 = vmul.f32 %v935, 0.054005586
    %v968 = vmul.f32 %v936, 0.054005586
    %v969 = vmul.f32 %v937, 0.054005586
    %v970 = vmul.f32 %v938, 0.054005586
    %v971 = vadd.f32 %v811, %v939
    %v972 = vadd.f32 %v812, %v940
    %v973 = vadd.f32 %v813, %v941
    %v974 = vadd.f32 %v814, %v942
    %v975 = vadd.f32 %v815, %v943
    %v976 = vadd.f32 %v816, %v944
    %v977 = vadd.f32 %v817, %v945
    %v978 = vadd.f32 %v818, %v946
    %v979 = vadd.f32 %v819, %v947
    %v980 = vadd.f32 %v820, %v948
    %v981 = vadd.f32 %v821, %v949
    %v982 = vadd.f32 %v822, %v950
    %v983 = vadd.f32 %v823, %v951
    %v984 = vadd.f32 %v824, %v952
    %v985 = vadd.f32 %v825, %v953
    %v986 = vadd.f32 %v826, %v954
    %v987 = vadd.f32 %v827, %v955
    %v988 = vadd.f32 %v828, %v956
    %v989 = vadd.f32 %v829, %v957
    %v990 = vadd.f32 %v830, %v958
    %v991 = vadd.f32 %v831, %v959
    %v992 = vadd.f32 %v832, %v960
    %v993 = vadd.f32 %v833, %v961
    %v994 = vadd.f32 %v834, %v962
    %v995 = vadd.f32 %v835, %v963
    %v996 = vadd.f32 %v836, %v964
    %v997 = vadd.f32 %v837, %v965
    %v998 = vadd.f32 %v838, %v966
    %v999 = vadd.f32 %v839, %v967
    %v1000 = vadd.f32 %v840, %v968
    %v1001 = vadd.f32 %v841, %v969
    %v1002 = vadd.f32 %v842, %v970
    %v1003 = vld [vmem:[#allocation2 + $0x5] sm:$0xff]
    %v1004 = vld [vmem:[#allocation2 + $0xd] sm:$0xff]
    %v1005 = vld [vmem:[#allocation2 + $0x25] sm:$0xff]
    %v1006 = vld [vmem:[#allocation2 + $0x2d] sm:$0xff]
    %v1007 = vld [vmem:[#allocation2 + $0x45] sm:$0xff]
    %v1008 = vld [vmem:[#allocation2 + $0x4d] sm:$0xff]
    %v1009 = vld [vmem:[#allocation2 + $0x65] sm:$0xff]
    %v1010 = vld [vmem:[#allocation2 + $0x6d] sm:$0xff]
    %v1011 = vld [vmem:[#allocation2 + $0x85] sm:$0xff]
    %v1012 = vld [vmem:[#allocation2 + $0x8d] sm:$0xff]
    %v1013 = vld [vmem:[#allocation2 + $0xa5] sm:$0xff]
    %v1014 = vld [vmem:[#allocation2 + $0xad] sm:$0xff]
    %v1015 = vld [vmem:[#allocation2 + $0xc5] sm:$0xff]
    %v1016 = vld [vmem:[#allocation2 + $0xcd] sm:$0xff]
    %v1017 = vld [vmem:[#allocation2 + $0xe5] sm:$0xff]
    %v1018 = vld [vmem:[#allocation2 + $0xed] sm:$0xff]
    %v1019 = vld [vmem:[#allocation2 + $0x105] sm:$0xff]
    %v1020 = vld [vmem:[#allocation2 + $0x10d] sm:$0xff]
    %v1021 = vld [vmem:[#allocation2 + $0x125] sm:$0xff]
    %v1022 = vld [vmem:[#allocation2 + $0x12d] sm:$0xff]
    %v1023 = vld [vmem:[#allocation2 + $0x145] sm:$0xff]
    %v1024 = vld [vmem:[#allocation2 + $0x14d] sm:$0xff]
    %v1025 = vld [vmem:[#allocation2 + $0x165] sm:$0xff]
    %v1026 = vld [vmem:[#allocation2 + $0x16d] sm:$0xff]
    %v1027 = vld [vmem:[#allocation2 + $0x185] sm:$0xff]
    %v1028 = vld [vmem:[#allocation2 + $0x18d] sm:$0xff]
    %v1029 = vld [vmem:[#allocation2 + $0x1a5] sm:$0xff]
    %v1030 = vld [vmem:[#allocation2 + $0x1ad] sm:$0xff]
    %v1031 = vld [vmem:[#allocation2 + $0x1c5] sm:$0xff]
    %v1032 = vld [vmem:[#allocation2 + $0x1cd] sm:$0xff]
    %v1033 = vld [vmem:[#allocation2 + $0x1e5] sm:$0xff]
    %v1034 = vld [vmem:[#allocation2 + $0x1ed] sm:$0xff]
    %v1035 = vld [vmem:[#allocation2 + $0xb] sm:$0xff]
    %v1036 = vld [vmem:[#allocation2 + $0x13] sm:$0xff]
    %v1037 = vld [vmem:[#allocation2 + $0x2b] sm:$0xff]
    %v1038 = vld [vmem:[#allocation2 + $0x33] sm:$0xff]
    %v1039 = vld [vmem:[#allocation2 + $0x4b] sm:$0xff]
    %v1040 = vld [vmem:[#allocation2 + $0x53] sm:$0xff]
    %v1041 = vld [vmem:[#allocation2 + $0x6b] sm:$0xff]
    %v1042 = vld [vmem:[#allocation2 + $0x73] sm:$0xff]
    %v1043 = vld [vmem:[#allocation2 + $0x8b] sm:$0xff]
    %v1044 = vld [vmem:[#allocation2 + $0x93] sm:$0xff]
    %v1045 = vld [vmem:[#allocation2 + $0xab] sm:$0xff]
    %v1046 = vld [vmem:[#allocation2 + $0xb3] sm:$0xff]
    %v1047 = vld [vmem:[#allocation2 + $0xcb] sm:$0xff]
    %v1048 = vld [vmem:[#allocation2 + $0xd3] sm:$0xff]
    %v1049 = vld [vmem:[#allocation2 + $0xeb] sm:$0xff]
    %v1050 = vld [vmem:[#allocation2 + $0xf3] sm:$0xff]
    %v1051 = vld [vmem:[#allocation2 + $0x10b] sm:$0xff]
    %v1052 = vld [vmem:[#allocation2 + $0x113] sm:$0xff]
    %v1053 = vld [vmem:[#allocation2 + $0x12b] sm:$0xff]
    %v1054 = vld [vmem:[#allocation2 + $0x133] sm:$0xff]
    %v1055 = vld [vmem:[#allocation2 + $0x14b] sm:$0xff]
    %v1056 = vld [vmem:[#allocation2 + $0x153] sm:$0xff]
    %v1057 = vld [vmem:[#allocation2 + $0x16b] sm:$0xff]
    %v1058 = vld [vmem:[#allocation2 + $0x173] sm:$0xff]
    %v1059 = vld [vmem:[#allocation2 + $0x18b] sm:$0xff]
    %v1060 = vld [vmem:[#allocation2 + $0x193] sm:$0xff]
    %v1061 = vld [vmem:[#allocation2 + $0x1ab] sm:$0xff]
    %v1062 = vld [vmem:[#allocation2 + $0x1b3] sm:$0xff]
    %v1063 = vld [vmem:[#allocation2 + $0x1cb] sm:$0xff]
    %v1064 = vld [vmem:[#allocation2 + $0x1d3] sm:$0xff]
    %v1065 = vld [vmem:[#allocation2 + $0x1eb] sm:$0xff]
    %v1066 = vld [vmem:[#allocation2 + $0x1f3] sm:$0xff]
    %v1067 = vadd.f32 %v1003, %v1035
    %v1068 = vadd.f32 %v1004, %v1036
    %v1069 = vadd.f32 %v1005, %v1037
    %v1070 = vadd.f32 %v1006, %v1038
    %v1071 = vadd.f32 %v1007, %v1039
    %v1072 = vadd.f32 %v1008, %v1040
    %v1073 = vadd.f32 %v1009, %v1041
    %v1074 = vadd.f32 %v1010, %v1042
    %v1075 = vadd.f32 %v1011, %v1043
    %v1076 = vadd.f32 %v1012, %v1044
    %v1077 = vadd.f32 %v1013, %v1045
    %v1078 = vadd.f32 %v1014, %v1046
    %v1079 = vadd.f32 %v1015, %v1047
    %v1080 = vadd.f32 %v1016, %v1048
    %v1081 = vadd.f32 %v1017, %v1049
    %v1082 = vadd.f32 %v1018, %v1050
    %v1083 = vadd.f32 %v1019, %v1051
    %v1084 = vadd.f32 %v1020, %v1052
    %v1085 = vadd.f32 %v1021, %v1053
    %v1086 = vadd.f32 %v1022, %v1054
    %v1087 = vadd.f32 %v1023, %v1055
    %v1088 = vadd.f32 %v1024, %v1056
    %v1089 = vadd.f32 %v1025, %v1057
    %v1090 = vadd.f32 %v1026, %v1058
    %v1091 = vadd.f32 %v1027, %v1059
    %v1092 = vadd.f32 %v1028, %v1060
    %v1093 = vadd.f32 %v1029, %v1061
    %v1094 = vadd.f32 %v1030, %v1062
    %v1095 = vadd.f32 %v1031, %v1063
    %v1096 = vadd.f32 %v1032, %v1064
    %v1097 = vadd.f32 %v1033, %v1065
    %v1098 = vadd.f32 %v1034, %v1066
    %v1099 = vmul.f32 %v1067, 0.004433048
    %v1100 = vmul.f32 %v1068, 0.004433048
    %v1101 = vmul.f32 %v1069, 0.004433048
    %v1102 = vmul.f32 %v1070, 0.004433048
    %v1103 = vmul.f32 %v1071, 0.004433048
    %v1104 = vmul.f32 %v1072, 0.004433048
    %v1105 = vmul.f32 %v1073, 0.004433048
    %v1106 = vmul.f32 %v1074, 0.004433048
    %v1107 = vmul.f32 %v1075, 0.004433048
    %v1108 = vmul.f32 %v1076, 0.004433048
    %v1109 = vmul.f32 %v1077, 0.004433048
    %v1110 = vmul.f32 %v1078, 0.004433048
    %v1111 = vmul.f32 %v1079, 0.004433048
    %v1112 = vmul.f32 %v1080, 0.004433048
    %v1113 = vmul.f32 %v1081, 0.004433048
    %v1114 = vmul.f32 %v1082, 0.004433048
    %v1115 = vmul.f32 %v1083, 0.004433048
    %v1116 = vmul.f32 %v1084, 0.004433048
    %v1117 = vmul.f32 %v1085, 0.004433048
    %v1118 = vmul.f32 %v1086, 0.004433048
    %v1119 = vmul.f32 %v1087, 0.004433048
    %v1120 = vmul.f32 %v1088, 0.004433048
    %v1121 = vmul.f32 %v1089, 0.004433048
    %v1122 = vmul.f32 %v1090, 0.004433048
    %v1123 = vmul.f32 %v1091, 0.004433048
    %v1124 = vmul.f32 %v1092, 0.004433048
    %v1125 = vmul.f32 %v1093, 0.004433048
    %v1126 = vmul.f32 %v1094, 0.004433048
    %v1127 = vmul.f32 %v1095, 0.004433048
    %v1128 = vmul.f32 %v1096, 0.004433048
    %v1129 = vmul.f32 %v1097, 0.004433048
    %v1130 = vmul.f32 %v1098, 0.004433048
    %v1131 = vadd.f32 %v971, %v1099
    %v1132 = vadd.f32 %v972, %v1100
    %v1133 = vadd.f32 %v973, %v1101
    %v1134 = vadd.f32 %v974, %v1102
    %v1135 = vadd.f32 %v975, %v1103
    %v1136 = vadd.f32 %v976, %v1104
    %v1137 = vadd.f32 %v977, %v1105
    %v1138 = vadd.f32 %v978, %v1106
    %v1139 = vadd.f32 %v979, %v1107
    %v1140 = vadd.f32 %v980, %v1108
    %v1141 = vadd.f32 %v981, %v1109
    %v1142 = vadd.f32 %v982, %v1110
    %v1143 = vadd.f32 %v983, %v1111
    %v1144 = vadd.f32 %v984, %v1112
    %v1145 = vadd.f32 %v985, %v1113
    %v1146 = vadd.f32 %v986, %v1114
    %v1147 = vadd.f32 %v987, %v1115
    %v1148 = vadd.f32 %v988, %v1116
    %v1149 = vadd.f32 %v989, %v1117
    %v1150 = vadd.f32 %v990, %v1118
    %v1151 = vadd.f32 %v991, %v1119
    %v1152 = vadd.f32 %v992, %v1120
    %v1153 = vadd.f32 %v993, %v1121
    %v1154 = vadd.f32 %v994, %v1122
    %v1155 = vadd.f32 %v995, %v1123
    %v1156 = vadd.f32 %v996, %v1124
    %v1157 = vadd.f32 %v997, %v1125
    %v1158 = vadd.f32 %v998, %v1126
    %v1159 = vadd.f32 %v999, %v1127
    %v1160 = vadd.f32 %v1000, %v1128
    %v1161 = vadd.f32 %v1001, %v1129
    %v1162 = vadd.f32 %v1002, %v1130
    %1163 = vst [vmem:[#allocation6] sm:$0xff] %v1131
    %1164 = vst [vmem:[#allocation6 + $0x8] sm:$0xff] %v1132
    %1165 = vst [vmem:[#allocation6 + $0x10] sm:$0xff] %v1133
    %1166 = vst [vmem:[#allocation6 + $0x18] sm:$0xff] %v1134
    %1167 = vst [vmem:[#allocation6 + $0x20] sm:$0xff] %v1135
    %1168 = vst [vmem:[#allocation6 + $0x28] sm:$0xff] %v1136
    %1169 = vst [vmem:[#allocation6 + $0x30] sm:$0xff] %v1137
    %1170 = vst [vmem:[#allocation6 + $0x38] sm:$0xff] %v1138
    %1171 = vst [vmem:[#allocation6 + $0x40] sm:$0xff] %v1139
    %1172 = vst [vmem:[#allocation6 + $0x48] sm:$0xff] %v1140
    %1173 = vst [vmem:[#allocation6 + $0x50] sm:$0xff] %v1141
    %1174 = vst [vmem:[#allocation6 + $0x58] sm:$0xff] %v1142
    %1175 = vst [vmem:[#allocation6 + $0x60] sm:$0xff] %v1143
    %1176 = vst [vmem:[#allocation6 + $0x68] sm:$0xff] %v1144
    %1177 = vst [vmem:[#allocation6 + $0x70] sm:$0xff] %v1145
    %1178 = vst [vmem:[#allocation6 + $0x78] sm:$0xff] %v1146
    %1179 = vst [vmem:[#allocation6 + $0x80] sm:$0xff] %v1147
    %1180 = vst [vmem:[#allocation6 + $0x88] sm:$0xff] %v1148
    %1181 = vst [vmem:[#allocation6 + $0x90] sm:$0xff] %v1149
    %1182 = vst [vmem:[#allocation6 + $0x98] sm:$0xff] %v1150
    %1183 = vst [vmem:[#allocation6 + $0xa0] sm:$0xff] %v1151
    %1184 = vst [vmem:[#allocation6 + $0xa8] sm:$0xff] %v1152
    %1185 = vst [vmem:[#allocation6 + $0xb0] sm:$0xff] %v1153
    %1186 = vst [vmem:[#allocation6 + $0xb8] sm:$0xff] %v1154
    %1187 = vst [vmem:[#allocation6 + $0xc0] sm:$0xff] %v1155
    %1188 = vst [vmem:[#allocation6 + $0xc8] sm:$0xff] %v1156
    %1189 = vst [vmem:[#allocation6 + $0xd0] sm:$0xff] %v1157
    %1190 = vst [vmem:[#allocation6 + $0xd8] sm:$0xff] %v1158
    %1191 = vst [vmem:[#allocation6 + $0xe0] sm:$0xff] %v1159
    %1192 = vst [vmem:[#allocation6 + $0xe8] sm:$0xff] %v1160
    %1193 = vst [vmem:[#allocation6 + $0xf0] sm:$0xff] %v1161
    %1194 = vst [vmem:[#allocation6 + $0xf8] sm:$0xff] %v1162
    // Predicated region
    $region14: #{tpu_custom_call.1} parent=1 // pred_check
      _
    $region15: #{tpu_custom_call.1} parent=1 // pred_check_branch
      %1196 = sbr.rel (0) target = $region17
    $region16: #{tpu_custom_call.1} parent=1 // pred_region
      %1198 = vsyncadd [#allocation5], 0
      %s1199 = sshll.u32 [#allocation6], 4
      %s1200 = int_to_ptr.vmem [resolvable:$true] %s1199
      %s1201 = sshll.u32 %s1, 4
      %s1202 = int_to_ptr.hbm [resolvable:$true] %s1201
      %1207 = dma.vmem_to_hbm [thread:$0]  %s1200, 4096, %s1202, [#allocation5], 128, 128, 8
    $region17: #{tpu_custom_call.1} parent=1 // pred_fallthru
      _
    // Predicated region
    $region18: #{tpu_custom_call.1} parent=1 // pred_check
      _
    $region19: #{tpu_custom_call.1} parent=1 // pred_check_branch
      %1209 = sbr.rel (0) target = $region21
    $region20: #{tpu_custom_call.1} parent=1 // pred_region
      %1211 = dma.done [#allocation5], 4096
    $region21: #{tpu_custom_call.1} parent=1 // pred_fallthru
      _
    %1212 = vsyncpa [#allocation4], 1
    %1213 = vsyncpa [#allocation5], 1

</llo_original>
